<compile_context>
chip_gen: v6e
topology: v6e:2x2x1
jax: 0.10.0
libtpu: 0.0.40
codegen_flags: <defaults>
</compile_context>

<pallas_src>
import functools

import jax
import jax.numpy as jnp
from jax.experimental import pallas as pl
from jax.experimental.pallas import tpu as pltpu

# Lane-aligned (padded) layer widths.
D_IN = 784       # 28*28, full-extent block (multiple of 8; last-dim equals array dim)
D_H1 = 384       # 300 padded up to 3*128
D_H2 = 128       # 100 padded up to 128
D_OUT = 128      # 10  padded up to 128
N_CLASSES = 10

DEFAULT_TILE_B = 1024  # multiple of 256; ~14 MiB VMEM footprint incl. double buffers


def _lenet_kernel(x_ref, w1_ref, b1_ref, w2_ref, b2_ref, w3_ref, b3_ref, o_ref):
    # x_ref: (TILE_B, 784) f32  (cast to bf16 here -> no separate XLA cast pass)
    # w1: (784, 384) bf16   b1: (1, 384) f32
    # w2: (384, 128) bf16   b2: (1, 128) f32
    # w3: (128, 128) bf16   b3: (1, 128) f32
    # o : (TILE_B, 128) bf16
    x = x_ref[...].astype(jnp.bfloat16)

    h1 = jnp.dot(x, w1_ref[...], preferred_element_type=jnp.float32) + b1_ref[...]
    h1 = jnp.maximum(h1, 0.0)  # F.relu

    h2 = jnp.dot(h1.astype(jnp.bfloat16), w2_ref[...],
                 preferred_element_type=jnp.float32) + b2_ref[...]
    h2 = jnp.maximum(h2, 0.0)  # F.relu

    out = jnp.dot(h2.astype(jnp.bfloat16), w3_ref[...],
                  preferred_element_type=jnp.float32) + b3_ref[...]
    o_ref[...] = out.astype(o_ref.dtype)


def prepare_params(params):
    """One-time preprocessing (do NOT call per forward):
    PyTorch nn.Linear stores W as (out, in); the kernel wants (in, out),
    zero-padded to lane-aligned widths, weights cast to bf16 (f32 accumulation
    happens on the MXU), biases kept in f32."""
    w1, b1, w2, b2, w3, b3 = params

    def pad_to(a, shape):
        return jnp.pad(a, [(0, s - d) for s, d in zip(shape, a.shape)])

    w1p = pad_to(w1.T, (D_IN, D_H1)).astype(jnp.bfloat16)
    b1p = pad_to(b1.reshape(1, -1), (1, D_H1)).astype(jnp.float32)
    w2p = pad_to(w2.T, (D_H1, D_H2)).astype(jnp.bfloat16)
    b2p = pad_to(b2.reshape(1, -1), (1, D_H2)).astype(jnp.float32)
    w3p = pad_to(w3.T, (D_H2, D_OUT)).astype(jnp.bfloat16)
    b3p = pad_to(b3.reshape(1, -1), (1, D_OUT)).astype(jnp.float32)
    return (w1p, b1p, w2p, b2p, w3p, b3p)


def _choose_tile_b(B, max_tile_b):
    """Pick a batch tile (static, from shapes):
    - B <= 8: single full-extent block (block dims == array dims is always legal).
    - otherwise: at most ceil(B/2) rounded up to a multiple of 8, so the grid has
      >= 2 tiles and both v7x TensorCores are engaged; capped at max_tile_b."""
    if B <= 8:
        return B
    half = -(-B // 2)
    half = -(-half // 8) * 8
    return max(8, min(max_tile_b, half))


@functools.partial(jax.jit, static_argnames=("max_tile_b",))
def lenet300_100_forward(x_nchw, prepped_params, max_tile_b=DEFAULT_TILE_B):
    """x_nchw: (B, 1, 28, 28) float32 -> logits (B, 10) float32."""
    B = x_nchw.shape[0]
    x_flat = x_nchw.reshape(B, -1)  # == torch flatten(start_dim=1); bitcast, no copy
    assert x_flat.shape[1] == D_IN
    x_flat = x_flat.astype(jnp.float32)  # no-op for f32 inputs; cast to bf16 in-kernel

    tile_b = _choose_tile_b(B, max_tile_b)
    n_tiles = pl.cdiv(B, tile_b)  # ragged last block: Pallas clips OOB output rows

    w1p, b1p, w2p, b2p, w3p, b3p = prepped_params

    # Resident (constant index_map) specs for weights/biases; only x / out stream.
    resident = lambda shape: pl.BlockSpec(shape, lambda i: (0, 0))

    flops = 2 * B * (D_IN * D_H1 + D_H1 * D_H2 + D_H2 * D_OUT)
    bytes_accessed = (B * D_IN * 4                                      # x (f32)
                      + (D_IN * D_H1 + D_H1 * D_H2 + D_H2 * D_OUT) * 2  # weights (bf16)
                      + (D_H1 + D_H2 + D_OUT) * 4                       # biases (f32)
                      + B * D_OUT * 2)                                  # output (bf16)

    out = pl.pallas_call(
        _lenet_kernel,
        out_shape=jax.ShapeDtypeStruct((B, D_OUT), jnp.bfloat16),
        grid=(n_tiles,),
        in_specs=[
            pl.BlockSpec((tile_b, D_IN), lambda i: (i, 0)),   # x tile (pipelined)
            resident((D_IN, D_H1)),                           # w1
            resident((1, D_H1)),                              # b1
            resident((D_H1, D_H2)),                           # w2
            resident((1, D_H2)),                              # b2
            resident((D_H2, D_OUT)),                          # w3
            resident((1, D_OUT)),                             # b3
        ],
        out_specs=pl.BlockSpec((tile_b, D_OUT), lambda i: (i, 0)),
        compiler_params=pltpu.CompilerParams(
            dimension_semantics=("parallel",),                # 2 TCs on v7x
            vmem_limit_bytes=48 * 1024 * 1024),               # tile_b=1024 fits v5e too
        cost_estimate=pl.CostEstimate(
            flops=flops, transcendentals=0, bytes_accessed=bytes_accessed),
    )(x_flat, w1p, b1p, w2p, b2p, w3p, b3p)

    # Slice the lane-padded bf16 slab back to (B, 10) f32 logits.
    return out[:, :N_CLASSES].astype(jnp.float32)


def init_lenet_params(key):
    """Deterministic init matching PyTorch nn.Linear default
    (uniform(-1/sqrt(fan_in), 1/sqrt(fan_in)) for weights and biases)."""
    sizes = [(300, 784), (100, 300), (10, 100)]
    params = []
    for (out_f, in_f) in sizes:
        key, kw, kb = jax.random.split(key, 3)
        bound = 1.0 / (in_f ** 0.5)
        w = jax.random.uniform(kw, (out_f, in_f), jnp.float32, -bound, bound)
        b = jax.random.uniform(kb, (out_f,), jnp.float32, -bound, bound)
        params.extend([w, b])
    return tuple(params)


def _reference_forward(x_nchw, params):
    """Plain-JAX f32 reference of the PyTorch forward for correctness checks."""
    w1, b1, w2, b2, w3, b3 = params
    x = x_nchw.reshape(x_nchw.shape[0], -1)
    x = jax.nn.relu(x @ w1.T + b1)
    x = jax.nn.relu(x @ w2.T + b2)
    return x @ w3.T + b3


if __name__ == "__main__":
    key = jax.random.PRNGKey(0)
    k_in, k_params, k_in2 = jax.random.split(key, 3)

    params = init_lenet_params(k_params)
    prepped = prepare_params(params)  # one-time transpose / pad / cast

    # Small primary test (batch=2 -> single full-extent block).
    batch = 2
    x = jax.random.normal(k_in, (batch, 1, 28, 28), dtype=jnp.float32)
    out = jax.block_until_ready(lenet300_100_forward(x, prepped))
    ref = _reference_forward(x, params)
    assert out.shape == (batch, N_CLASSES)
    # bf16 matmuls / bf16 output store with f32 accumulation: relaxed tolerance.
    assert jnp.allclose(out, ref, atol=3e-2, rtol=3e-2), (
        f"max abs err {jnp.max(jnp.abs(out - ref))}")

    # Secondary check: ragged last block + >=2 grid tiles (no batch padding path).
    batch2 = 300
    x2 = jax.random.normal(k_in2, (batch2, 1, 28, 28), dtype=jnp.float32)
    out2 = jax.block_until_ready(lenet300_100_forward(x2, prepped))
    ref2 = _reference_forward(x2, params)
    assert out2.shape == (batch2, N_CLASSES)
    assert jnp.allclose(out2, ref2, atol=3e-2, rtol=3e-2), (
        f"max abs err {jnp.max(jnp.abs(out2 - ref2))}")

    print("KERNEL_OK")
</pallas_src>

<mosaic_0001>
module attributes {stable_mosaic.version = 11 : i64} {
  func.func @_lenet_kernel(%arg0: i32, %arg1: memref<2x784xf32, #tpu.memory_space<vmem>>, %arg2: memref<784x384xbf16, #tpu.memory_space<vmem>>, %arg3: memref<1x384xf32, #tpu.memory_space<vmem>>, %arg4: memref<384x128xbf16, #tpu.memory_space<vmem>>, %arg5: memref<1x128xf32, #tpu.memory_space<vmem>>, %arg6: memref<128x128xbf16, #tpu.memory_space<vmem>>, %arg7: memref<1x128xf32, #tpu.memory_space<vmem>>, %arg8: memref<2x128xbf16, #tpu.memory_space<vmem>>) attributes {dimension_semantics = [#tpu.dimension_semantics<parallel>], iteration_bounds = array<i64: 1>, scalar_prefetch = 0 : i64, scratch_operands = 0 : i64, tpu.core_type = #tpu.core_type<tc>, window_params = [{transform_indices = @transform_0, window_bounds = array<i64: 2, 784>}, {pipeline_mode = #tpu.pipeline_mode<synchronous>, transform_indices = @transform_1, window_bounds = array<i64: 784, 384>}, {pipeline_mode = #tpu.pipeline_mode<synchronous>, transform_indices = @transform_2, window_bounds = array<i64: 1, 384>}, {pipeline_mode = #tpu.pipeline_mode<synchronous>, transform_indices = @transform_3, window_bounds = array<i64: 384, 128>}, {pipeline_mode = #tpu.pipeline_mode<synchronous>, transform_indices = @transform_4, window_bounds = array<i64: 1, 128>}, {pipeline_mode = #tpu.pipeline_mode<synchronous>, transform_indices = @transform_5, window_bounds = array<i64: 128, 128>}, {pipeline_mode = #tpu.pipeline_mode<synchronous>, transform_indices = @transform_6, window_bounds = array<i64: 1, 128>}, {transform_indices = @transform_7, window_bounds = array<i64: 2, 128>}]} {
    %c0 = arith.constant 0 : index
    %c0_0 = arith.constant 0 : index
    %0 = vector.load %arg1[%c0, %c0_0] : memref<2x784xf32, #tpu.memory_space<vmem>>, vector<2x784xf32>
    %1 = arith.truncf %0 : vector<2x784xf32> to vector<2x784xbf16>
    %c0_1 = arith.constant 0 : index
    %c0_2 = arith.constant 0 : index
    %2 = vector.load %arg2[%c0_1, %c0_2] : memref<784x384xbf16, #tpu.memory_space<vmem>>, vector<784x384xbf16>
    %cst = arith.constant dense<0.000000e+00> : vector<2x384xf32>
    %3 = tpu.matmul %1, %2, %cst {dimension_numbers = #tpu.dot_dimension_numbers<[1], [0], [0], [1], [0, 0, 1, 1], [], []>} : vector<2x784xbf16>, vector<784x384xbf16>, vector<2x384xf32> -> vector<2x384xf32>
    %c0_3 = arith.constant 0 : index
    %c0_4 = arith.constant 0 : index
    %4 = vector.load %arg3[%c0_3, %c0_4] : memref<1x384xf32, #tpu.memory_space<vmem>>, vector<1x384xf32>
    %5 = vector.broadcast %4 : vector<1x384xf32> to vector<2x384xf32>
    %6 = arith.addf %3, %5 : vector<2x384xf32>
    %cst_5 = arith.constant 0.000000e+00 : f32
    %7 = vector.broadcast %cst_5 : f32 to vector<2x384xf32>
    %8 = arith.maximumf %6, %7 : vector<2x384xf32>
    %9 = arith.truncf %8 : vector<2x384xf32> to vector<2x384xbf16>
    %c0_6 = arith.constant 0 : index
    %c0_7 = arith.constant 0 : index
    %10 = vector.load %arg4[%c0_6, %c0_7] : memref<384x128xbf16, #tpu.memory_space<vmem>>, vector<384x128xbf16>
    %cst_8 = arith.constant dense<0.000000e+00> : vector<2x128xf32>
    %11 = tpu.matmul %9, %10, %cst_8 {dimension_numbers = #tpu.dot_dimension_numbers<[1], [0], [0], [1], [0, 0, 1, 1], [], []>} : vector<2x384xbf16>, vector<384x128xbf16>, vector<2x128xf32> -> vector<2x128xf32>
    %c0_9 = arith.constant 0 : index
    %c0_10 = arith.constant 0 : index
    %12 = vector.load %arg5[%c0_9, %c0_10] : memref<1x128xf32, #tpu.memory_space<vmem>>, vector<1x128xf32>
    %13 = vector.broadcast %12 : vector<1x128xf32> to vector<2x128xf32>
    %14 = arith.addf %11, %13 : vector<2x128xf32>
    %cst_11 = arith.constant 0.000000e+00 : f32
    %15 = vector.broadcast %cst_11 : f32 to vector<2x128xf32>
    %16 = arith.maximumf %14, %15 : vector<2x128xf32>
    %17 = arith.truncf %16 : vector<2x128xf32> to vector<2x128xbf16>
    %c0_12 = arith.constant 0 : index
    %c0_13 = arith.constant 0 : index
    %18 = vector.load %arg6[%c0_12, %c0_13] : memref<128x128xbf16, #tpu.memory_space<vmem>>, vector<128x128xbf16>
    %cst_14 = arith.constant dense<0.000000e+00> : vector<2x128xf32>
    %19 = tpu.matmul %17, %18, %cst_14 {dimension_numbers = #tpu.dot_dimension_numbers<[1], [0], [0], [1], [0, 0, 1, 1], [], []>} : vector<2x128xbf16>, vector<128x128xbf16>, vector<2x128xf32> -> vector<2x128xf32>
    %c0_15 = arith.constant 0 : index
    %c0_16 = arith.constant 0 : index
    %20 = vector.load %arg7[%c0_15, %c0_16] : memref<1x128xf32, #tpu.memory_space<vmem>>, vector<1x128xf32>
    %21 = vector.broadcast %20 : vector<1x128xf32> to vector<2x128xf32>
    %22 = arith.addf %19, %21 : vector<2x128xf32>
    %23 = arith.truncf %22 : vector<2x128xf32> to vector<2x128xbf16>
    %c0_17 = arith.constant 0 : index
    %c0_18 = arith.constant 0 : index
    %24 = vector.load %arg8[%c0_17, %c0_18] : memref<2x128xbf16, #tpu.memory_space<vmem>>, vector<2x128xbf16>
    tpu.vector_store %arg8[%c0_17, %c0_18], %23 {strides = array<i32>} : memref<2x128xbf16, #tpu.memory_space<vmem>>, vector<2x128xbf16>,
    return
  }
  func.func @transform_0(%arg0: i32) -> (i32, i32) {
    %c0_i32 = arith.constant 0 : i32
    %c0_i32_0 = arith.constant 0 : i32
    return %arg0, %c0_i32 : i32, i32
  }
  func.func @transform_1(%arg0: i32) -> (i32, i32) {
    %c0_i32 = arith.constant 0 : i32
    %c0_i32_0 = arith.constant 0 : i32
    %c0_i32_1 = arith.constant 0 : i32
    return %c0_i32, %c0_i32_0 : i32, i32
  }
  func.func @transform_2(%arg0: i32) -> (i32, i32) {
    %c0_i32 = arith.constant 0 : i32
    %c0_i32_0 = arith.constant 0 : i32
    %c0_i32_1 = arith.constant 0 : i32
    return %c0_i32, %c0_i32_0 : i32, i32
  }
  func.func @transform_3(%arg0: i32) -> (i32, i32) {
    %c0_i32 = arith.constant 0 : i32
    %c0_i32_0 = arith.constant 0 : i32
    %c0_i32_1 = arith.constant 0 : i32
    return %c0_i32, %c0_i32_0 : i32, i32
  }
  func.func @transform_4(%arg0: i32) -> (i32, i32) {
    %c0_i32 = arith.constant 0 : i32
    %c0_i32_0 = arith.constant 0 : i32
    %c0_i32_1 = arith.constant 0 : i32
    return %c0_i32, %c0_i32_0 : i32, i32
  }
  func.func @transform_5(%arg0: i32) -> (i32, i32) {
    %c0_i32 = arith.constant 0 : i32
    %c0_i32_0 = arith.constant 0 : i32
    %c0_i32_1 = arith.constant 0 : i32
    return %c0_i32, %c0_i32_0 : i32, i32
  }
  func.func @transform_6(%arg0: i32) -> (i32, i32) {
    %c0_i32 = arith.constant 0 : i32
    %c0_i32_0 = arith.constant 0 : i32
    %c0_i32_1 = arith.constant 0 : i32
    return %c0_i32, %c0_i32_0 : i32, i32
  }
  func.func @transform_7(%arg0: i32) -> (i32, i32) {
    %c0_i32 = arith.constant 0 : i32
    %c0_i32_0 = arith.constant 0 : i32
    return %arg0, %c0_i32 : i32, i32
  }
}

</mosaic_0001>

<llo_original>
// kernel: lenet300_100_forward.1
$region0: #{lenet300_100_forward.1}
  #allocation0 [shape = 'u32[]', space=smem, size = 0x4, offset = 0x4, fixed_abs, tag = 'smem constant byte address 0x4 - core index']
  #allocation1 [shape = 'u32[144,128]{1,0:T(1,128)}', space=vmem, size = 0x12000, scoped, tag = 'internal scratch']
  %s0 = inlined_call_operand.vmem [shape: f32[2,784], index: 0, kind: input, shape index: {}]
  %s1 = inlined_call_operand.hbm [shape: bf16[784,384], index: 1, kind: input, shape index: {}]
  %s2 = inlined_call_operand.vmem [shape: f32[1,384], index: 2, kind: input, shape index: {}]
  %s3 = inlined_call_operand.vmem [shape: bf16[384,128], index: 3, kind: input, shape index: {}]
  %s4 = inlined_call_operand.vmem [shape: f32[1,128], index: 4, kind: input, shape index: {}]
  %s5 = inlined_call_operand.hbm [shape: bf16[128,128], index: 5, kind: input, shape index: {}]
  %s6 = inlined_call_operand.vmem [shape: f32[1,128], index: 6, kind: input, shape index: {}]
  %s7 = inlined_call_operand.vmem [shape: bf16[2,128], index: 7, kind: output, shape index: {}]
  %s8 = sld [smem:[#allocation0]]
  $region46: #{lenet300_100_forward.1} parent=0
    _
  %s10 = ssub.s32 1, %s8
  %s11 = scalar_select 0, %s10, %s8
  $region1: #{lenet300_100_forward.1} parent=0
    #allocation2 [shape = 'u8[602112]{0}', space=vmem, size = 0x93000, scoped, tag = 'input window, operand 1, single buffered']
    #allocation3 [shape = 's32[1]{0}', space=sflag, size = 0x4, scoped, tag = 'scoped memory for lenet300_100_forward.1']
    #allocation4 [shape = 'u8[32768]{0}', space=vmem, size = 0x8000, scoped, tag = 'input window, operand 5, single buffered']
    #allocation5 [shape = 's32[1]{0}', space=sflag, size = 0x4, scoped, tag = 'scoped memory for lenet300_100_forward.1']
    %12 = vsyncpa [#allocation3], 0
    %13 = vsyncpa [#allocation5], 0
    // Predicated region
    $region2: #{lenet300_100_forward.1} parent=1 // pred_check
      _
    $region3: #{lenet300_100_forward.1} parent=1 // pred_check_branch
      %15 = sbr.rel (0) target = $region5
    $region4: #{lenet300_100_forward.1} parent=1 // pred_region
      _
    $region5: #{lenet300_100_forward.1} parent=1 // pred_fallthru
      _
    // Predicated region
    $region6: #{lenet300_100_forward.1} parent=1 // pred_check
      _
    $region7: #{lenet300_100_forward.1} parent=1 // pred_check_branch
      %17 = sbr.rel (0) target = $region9
    $region8: #{lenet300_100_forward.1} parent=1 // pred_region
      %s19 = ssub.s32 18816, 18816
      %20 = vsyncadd [#allocation3], %s19
      %s21 = sshll.u32 [#allocation2], 4
      %s22 = int_to_ptr.vmem [resolvable:$true] %s21
      %27 = dma.hbm_to_vmem [thread:$0]  %s1, 18816, %s22, [#allocation3], 192, 192, 12
    $region9: #{lenet300_100_forward.1} parent=1 // pred_fallthru
      _
    // Predicated region
    $region10: #{lenet300_100_forward.1} parent=1 // pred_check
      _
    $region11: #{lenet300_100_forward.1} parent=1 // pred_check_branch
      %29 = sbr.rel (0) target = $region13
    $region12: #{lenet300_100_forward.1} parent=1 // pred_region
      _
    $region13: #{lenet300_100_forward.1} parent=1 // pred_fallthru
      _
    // Predicated region
    $region14: #{lenet300_100_forward.1} parent=1 // pred_check
      _
    $region15: #{lenet300_100_forward.1} parent=1 // pred_check_branch
      %31 = sbr.rel (0) target = $region17
    $region16: #{lenet300_100_forward.1} parent=1 // pred_region
      _
    $region17: #{lenet300_100_forward.1} parent=1 // pred_fallthru
      _
    // Predicated region
    $region18: #{lenet300_100_forward.1} parent=1 // pred_check
      _
    $region19: #{lenet300_100_forward.1} parent=1 // pred_check_branch
      %33 = sbr.rel (0) target = $region21
    $region20: #{lenet300_100_forward.1} parent=1 // pred_region
      _
    $region21: #{lenet300_100_forward.1} parent=1 // pred_fallthru
      _
    // Predicated region
    $region22: #{lenet300_100_forward.1} parent=1 // pred_check
      _
    $region23: #{lenet300_100_forward.1} parent=1 // pred_check_branch
      %35 = sbr.rel (0) target = $region25
    $region24: #{lenet300_100_forward.1} parent=1 // pred_region
      %s37 = ssub.s32 1024, 1024
      %38 = vsyncadd [#allocation5], %s37
      %s39 = sshll.u32 [#allocation4], 4
      %s40 = int_to_ptr.vmem [resolvable:$true] %s39
      %45 = dma.hbm_to_vmem [thread:$0]  %s5, 1024, %s40, [#allocation5], 64, 64, 4
    $region25: #{lenet300_100_forward.1} parent=1 // pred_fallthru
      _
    // Predicated region
    $region26: #{lenet300_100_forward.1} parent=1 // pred_check
      _
    $region27: #{lenet300_100_forward.1} parent=1 // pred_check_branch
      %47 = sbr.rel (0) target = $region29
    $region28: #{lenet300_100_forward.1} parent=1 // pred_region
      _
    $region29: #{lenet300_100_forward.1} parent=1 // pred_fallthru
      _
    // Predicated region
    $region30: #{lenet300_100_forward.1} parent=1 // pred_check
      _
    $region31: #{lenet300_100_forward.1} parent=1 // pred_check_branch
      %49 = sbr.rel (0) target = $region33
    $region32: #{lenet300_100_forward.1} parent=1 // pred_region
      %50 = dma.done [#allocation3], 18816
    $region33: #{lenet300_100_forward.1} parent=1 // pred_fallthru
      _
    // Predicated region
    $region34: #{lenet300_100_forward.1} parent=1 // pred_check
      _
    $region35: #{lenet300_100_forward.1} parent=1 // pred_check_branch
      %52 = sbr.rel (0) target = $region37
    $region36: #{lenet300_100_forward.1} parent=1 // pred_region
      %53 = dma.done [#allocation5], 1024
    $region37: #{lenet300_100_forward.1} parent=1 // pred_fallthru
      _
    %v55 = vld [vmem:[%s0] sm:$0xff]
    %v56 = vld [vmem:[%s0 + $0x8] sm:$0x3f]
    %v59 = vcombine.high %v55, %v55
    %v61 = vunpack.c.l.s4 1983009808
    %v62 = vunpack.c.0.s8 %v61
    %v63 = vlaneseq
    %v64 = vshrl.u32 %v63, 7
    %v65 = vsub.s32 %v62, %v64
    %v66 = vrot.slane %v55, %v65
    %v68 = vunpack.c.l.s4 1983009808
    %v69 = vunpack.c.0.s8 %v68
    %v70 = vlaneseq
    %v71 = vshrl.u32 %v70, 7
    %v72 = vsub.s32 %v69, %v71
    %v73 = vrot.slane %v59, %v72
    %v74 = vcombine.high %v66, %v66
    %v75 = vcombine.high %v73, %v73
    %v76 = vcombine.high %v56, %v56
    %v78 = vunpack.c.l.s4 1983009808
    %v79 = vunpack.c.0.s8 %v78
    %v80 = vlaneseq
    %v81 = vshrl.u32 %v80, 7
    %v82 = vsub.s32 %v79, %v81
    %v83 = vrot.slane %v56, %v82
    %v85 = vunpack.c.l.s4 1983009808
    %v86 = vunpack.c.0.s8 %v85
    %v87 = vlaneseq
    %v88 = vshrl.u32 %v87, 7
    %v89 = vsub.s32 %v86, %v88
    %v90 = vrot.slane %v76, %v89
    %v91 = vcombine.high %v83, %v83
    %v99 = vpack.c.bf16 %v66, %v66
    %v100 = vpack.c.bf16 %v74, %v74
    %v101 = vpack.c.bf16 %v73, %v73
    %v102 = vpack.c.bf16 %v75, %v75
    %v103 = vpack.c.bf16 %v83, %v83
    %v104 = vpack.c.bf16 %v91, %v91
    %v105 = vpack.c.bf16 %v90, %v90
    %v106 = vld [vmem:[#allocation2] sm:$0xff]
    %v107 = vld [vmem:[#allocation2 + $0x8] sm:$0xf]
    %v108 = vld [vmem:[#allocation2 + $0xc] sm:$0xff]
    %v109 = vld [vmem:[#allocation2 + $0x14] sm:$0xf]
    %v110 = vld [vmem:[#allocation2 + $0x18] sm:$0xff]
    %v111 = vld [vmem:[#allocation2 + $0x20] sm:$0xf]
    %v112 = vld [vmem:[#allocation2 + $0x24] sm:$0xff]
    %v113 = vld [vmem:[#allocation2 + $0x2c] sm:$0xf]
    %v114 = vld [vmem:[#allocation2 + $0x30] sm:$0xff]
    %v115 = vld [vmem:[#allocation2 + $0x38] sm:$0xf]
    %v116 = vld [vmem:[#allocation2 + $0x3c] sm:$0xff]
    %v117 = vld [vmem:[#allocation2 + $0x44] sm:$0xf]
    %v118 = vld [vmem:[#allocation2 + $0x48] sm:$0xff]
    %v119 = vld [vmem:[#allocation2 + $0x50] sm:$0xf]
    %v120 = vld [vmem:[#allocation2 + $0x54] sm:$0xff]
    %v121 = vld [vmem:[#allocation2 + $0x5c] sm:$0xf]
    %v122 = vld [vmem:[#allocation2 + $0x60] sm:$0xff]
    %v123 = vld [vmem:[#allocation2 + $0x68] sm:$0xf]
    %v124 = vld [vmem:[#allocation2 + $0x6c] sm:$0xff]
    %v125 = vld [vmem:[#allocation2 + $0x74] sm:$0xf]
    %v126 = vld [vmem:[#allocation2 + $0x78] sm:$0xff]
    %v127 = vld [vmem:[#allocation2 + $0x80] sm:$0xf]
    %v128 = vld [vmem:[#allocation2 + $0x84] sm:$0xff]
    %v129 = vld [vmem:[#allocation2 + $0x8c] sm:$0xf]
    %v130 = vld [vmem:[#allocation2 + $0x90] sm:$0xff]
    %v131 = vld [vmem:[#allocation2 + $0x98] sm:$0xf]
    %v132 = vld [vmem:[#allocation2 + $0x9c] sm:$0xff]
    %v133 = vld [vmem:[#allocation2 + $0xa4] sm:$0xf]
    %v134 = vld [vmem:[#allocation2 + $0xa8] sm:$0xff]
    %v135 = vld [vmem:[#allocation2 + $0xb0] sm:$0xf]
    %v136 = vld [vmem:[#allocation2 + $0xb4] sm:$0xff]
    %v137 = vld [vmem:[#allocation2 + $0xbc] sm:$0xf]
    %v138 = vld [vmem:[#allocation2 + $0xc0] sm:$0xff]
    %v139 = vld [vmem:[#allocation2 + $0xc8] sm:$0xf]
    %v140 = vld [vmem:[#allocation2 + $0xcc] sm:$0xff]
    %v141 = vld [vmem:[#allocation2 + $0xd4] sm:$0xf]
    %v142 = vld [vmem:[#allocation2 + $0xd8] sm:$0xff]
    %v143 = vld [vmem:[#allocation2 + $0xe0] sm:$0xf]
    %v144 = vld [vmem:[#allocation2 + $0xe4] sm:$0xff]
    %v145 = vld [vmem:[#allocation2 + $0xec] sm:$0xf]
    %v146 = vld [vmem:[#allocation2 + $0xf0] sm:$0xff]
    %v147 = vld [vmem:[#allocation2 + $0xf8] sm:$0xf]
    %v148 = vld [vmem:[#allocation2 + $0xfc] sm:$0xff]
    %v149 = vld [vmem:[#allocation2 + $0x104] sm:$0xf]
    %v150 = vld [vmem:[#allocation2 + $0x108] sm:$0xff]
    %v151 = vld [vmem:[#allocation2 + $0x110] sm:$0xf]
    %v152 = vld [vmem:[#allocation2 + $0x114] sm:$0xff]
    %v153 = vld [vmem:[#allocation2 + $0x11c] sm:$0xf]
    %v154 = vld [vmem:[#allocation2 + $0x120] sm:$0xff]
    %v155 = vld [vmem:[#allocation2 + $0x128] sm:$0xf]
    %v156 = vld [vmem:[#allocation2 + $0x12c] sm:$0xff]
    %v157 = vld [vmem:[#allocation2 + $0x134] sm:$0xf]
    %v158 = vld [vmem:[#allocation2 + $0x138] sm:$0xff]
    %v159 = vld [vmem:[#allocation2 + $0x140] sm:$0xf]
    %v160 = vld [vmem:[#allocation2 + $0x144] sm:$0xff]
    %v161 = vld [vmem:[#allocation2 + $0x14c] sm:$0xf]
    %v162 = vld [vmem:[#allocation2 + $0x150] sm:$0xff]
    %v163 = vld [vmem:[#allocation2 + $0x158] sm:$0xf]
    %v164 = vld [vmem:[#allocation2 + $0x15c] sm:$0xff]
    %v165 = vld [vmem:[#allocation2 + $0x164] sm:$0xf]
    %v166 = vld [vmem:[#allocation2 + $0x168] sm:$0xff]
    %v167 = vld [vmem:[#allocation2 + $0x170] sm:$0xf]
    %v168 = vld [vmem:[#allocation2 + $0x174] sm:$0xff]
    %v169 = vld [vmem:[#allocation2 + $0x17c] sm:$0xf]
    %v170 = vld [vmem:[#allocation2 + $0x180] sm:$0xff]
    %v171 = vld [vmem:[#allocation2 + $0x188] sm:$0xf]
    %v172 = vld [vmem:[#allocation2 + $0x18c] sm:$0xff]
    %v173 = vld [vmem:[#allocation2 + $0x194] sm:$0xf]
    %v174 = vld [vmem:[#allocation2 + $0x198] sm:$0xff]
    %v175 = vld [vmem:[#allocation2 + $0x1a0] sm:$0xf]
    %v176 = vld [vmem:[#allocation2 + $0x1a4] sm:$0xff]
    %v177 = vld [vmem:[#allocation2 + $0x1ac] sm:$0xf]
    %v178 = vld [vmem:[#allocation2 + $0x1b0] sm:$0xff]
    %v179 = vld [vmem:[#allocation2 + $0x1b8] sm:$0xf]
    %v180 = vld [vmem:[#allocation2 + $0x1bc] sm:$0xff]
    %v181 = vld [vmem:[#allocation2 + $0x1c4] sm:$0xf]
    %v182 = vld [vmem:[#allocation2 + $0x1c8] sm:$0xff]
    %v183 = vld [vmem:[#allocation2 + $0x1d0] sm:$0xf]
    %v184 = vld [vmem:[#allocation2 + $0x1d4] sm:$0xff]
    %v185 = vld [vmem:[#allocation2 + $0x1dc] sm:$0xf]
    %v186 = vld [vmem:[#allocation2 + $0x1e0] sm:$0xff]
    %v187 = vld [vmem:[#allocation2 + $0x1e8] sm:$0xf]
    %v188 = vld [vmem:[#allocation2 + $0x1ec] sm:$0xff]
    %v189 = vld [vmem:[#allocation2 + $0x1f4] sm:$0xf]
    %v190 = vld [vmem:[#allocation2 + $0x1f8] sm:$0xff]
    %v191 = vld [vmem:[#allocation2 + $0x200] sm:$0xf]
    %v192 = vld [vmem:[#allocation2 + $0x204] sm:$0xff]
    %v193 = vld [vmem:[#allocation2 + $0x20c] sm:$0xf]
    %v194 = vld [vmem:[#allocation2 + $0x210] sm:$0xff]
    %v195 = vld [vmem:[#allocation2 + $0x218] sm:$0xf]
    %v196 = vld [vmem:[#allocation2 + $0x21c] sm:$0xff]
    %v197 = vld [vmem:[#allocation2 + $0x224] sm:$0xf]
    %v198 = vld [vmem:[#allocation2 + $0x228] sm:$0xff]
    %v199 = vld [vmem:[#allocation2 + $0x230] sm:$0xf]
    %v200 = vld [vmem:[#allocation2 + $0x234] sm:$0xff]
    %v201 = vld [vmem:[#allocation2 + $0x23c] sm:$0xf]
    %v202 = vld [vmem:[#allocation2 + $0x240] sm:$0xff]
    %v203 = vld [vmem:[#allocation2 + $0x248] sm:$0xf]
    %v204 = vld [vmem:[#allocation2 + $0x24c] sm:$0xff]
    %v205 = vld [vmem:[#allocation2 + $0x254] sm:$0xf]
    %v206 = vld [vmem:[#allocation2 + $0x258] sm:$0xff]
    %v207 = vld [vmem:[#allocation2 + $0x260] sm:$0xf]
    %v208 = vld [vmem:[#allocation2 + $0x264] sm:$0xff]
    %v209 = vld [vmem:[#allocation2 + $0x26c] sm:$0xf]
    %v210 = vld [vmem:[#allocation2 + $0x270] sm:$0xff]
    %v211 = vld [vmem:[#allocation2 + $0x278] sm:$0xf]
    %v212 = vld [vmem:[#allocation2 + $0x27c] sm:$0xff]
    %v213 = vld [vmem:[#allocation2 + $0x284] sm:$0xf]
    %v214 = vld [vmem:[#allocation2 + $0x288] sm:$0xff]
    %v215 = vld [vmem:[#allocation2 + $0x290] sm:$0xf]
    %v216 = vld [vmem:[#allocation2 + $0x294] sm:$0xff]
    %v217 = vld [vmem:[#allocation2 + $0x29c] sm:$0xf]
    %v218 = vld [vmem:[#allocation2 + $0x2a0] sm:$0xff]
    %v219 = vld [vmem:[#allocation2 + $0x2a8] sm:$0xf]
    %v220 = vld [vmem:[#allocation2 + $0x2ac] sm:$0xff]
    %v221 = vld [vmem:[#allocation2 + $0x2b4] sm:$0xf]
    %v222 = vld [vmem:[#allocation2 + $0x2b8] sm:$0xff]
    %v223 = vld [vmem:[#allocation2 + $0x2c0] sm:$0xf]
    %v224 = vld [vmem:[#allocation2 + $0x2c4] sm:$0xff]
    %v225 = vld [vmem:[#allocation2 + $0x2cc] sm:$0xf]
    %v226 = vld [vmem:[#allocation2 + $0x2d0] sm:$0xff]
    %v227 = vld [vmem:[#allocation2 + $0x2d8] sm:$0xf]
    %v228 = vld [vmem:[#allocation2 + $0x2dc] sm:$0xff]
    %v229 = vld [vmem:[#allocation2 + $0x2e4] sm:$0xf]
    %v230 = vld [vmem:[#allocation2 + $0x2e8] sm:$0xff]
    %v231 = vld [vmem:[#allocation2 + $0x2f0] sm:$0xf]
    %v232 = vld [vmem:[#allocation2 + $0x2f4] sm:$0xff]
    %v233 = vld [vmem:[#allocation2 + $0x2fc] sm:$0xf]
    %v234 = vld [vmem:[#allocation2 + $0x300] sm:$0xff]
    %v235 = vld [vmem:[#allocation2 + $0x308] sm:$0xf]
    %v236 = vld [vmem:[#allocation2 + $0x30c] sm:$0xff]
    %v237 = vld [vmem:[#allocation2 + $0x314] sm:$0xf]
    %v238 = vld [vmem:[#allocation2 + $0x318] sm:$0xff]
    %v239 = vld [vmem:[#allocation2 + $0x320] sm:$0xf]
    %v240 = vld [vmem:[#allocation2 + $0x324] sm:$0xff]
    %v241 = vld [vmem:[#allocation2 + $0x32c] sm:$0xf]
    %v242 = vld [vmem:[#allocation2 + $0x330] sm:$0xff]
    %v243 = vld [vmem:[#allocation2 + $0x338] sm:$0xf]
    %v244 = vld [vmem:[#allocation2 + $0x33c] sm:$0xff]
    %v245 = vld [vmem:[#allocation2 + $0x344] sm:$0xf]
    %v246 = vld [vmem:[#allocation2 + $0x348] sm:$0xff]
    %v247 = vld [vmem:[#allocation2 + $0x350] sm:$0xf]
    %v248 = vld [vmem:[#allocation2 + $0x354] sm:$0xff]
    %v249 = vld [vmem:[#allocation2 + $0x35c] sm:$0xf]
    %v250 = vld [vmem:[#allocation2 + $0x360] sm:$0xff]
    %v251 = vld [vmem:[#allocation2 + $0x368] sm:$0xf]
    %v252 = vld [vmem:[#allocation2 + $0x36c] sm:$0xff]
    %v253 = vld [vmem:[#allocation2 + $0x374] sm:$0xf]
    %v254 = vld [vmem:[#allocation2 + $0x378] sm:$0xff]
    %v255 = vld [vmem:[#allocation2 + $0x380] sm:$0xf]
    %v256 = vld [vmem:[#allocation2 + $0x384] sm:$0xff]
    %v257 = vld [vmem:[#allocation2 + $0x38c] sm:$0xf]
    %v258 = vld [vmem:[#allocation2 + $0x390] sm:$0xff]
    %v259 = vld [vmem:[#allocation2 + $0x398] sm:$0xf]
    %v260 = vld [vmem:[#allocation2 + $0x39c] sm:$0xff]
    %v261 = vld [vmem:[#allocation2 + $0x3a4] sm:$0xf]
    %v262 = vld [vmem:[#allocation2 + $0x3a8] sm:$0xff]
    %v263 = vld [vmem:[#allocation2 + $0x3b0] sm:$0xf]
    %v264 = vld [vmem:[#allocation2 + $0x3b4] sm:$0xff]
    %v265 = vld [vmem:[#allocation2 + $0x3bc] sm:$0xf]
    %v266 = vld [vmem:[#allocation2 + $0x3c0] sm:$0xff]
    %v267 = vld [vmem:[#allocation2 + $0x3c8] sm:$0xf]
    %v268 = vld [vmem:[#allocation2 + $0x3cc] sm:$0xff]
    %v269 = vld [vmem:[#allocation2 + $0x3d4] sm:$0xf]
    %v270 = vld [vmem:[#allocation2 + $0x3d8] sm:$0xff]
    %v271 = vld [vmem:[#allocation2 + $0x3e0] sm:$0xf]
    %v272 = vld [vmem:[#allocation2 + $0x3e4] sm:$0xff]
    %v273 = vld [vmem:[#allocation2 + $0x3ec] sm:$0xf]
    %v274 = vld [vmem:[#allocation2 + $0x3f0] sm:$0xff]
    %v275 = vld [vmem:[#allocation2 + $0x3f8] sm:$0xf]
    %v276 = vld [vmem:[#allocation2 + $0x3fc] sm:$0xff]
    %v277 = vld [vmem:[#allocation2 + $0x404] sm:$0xf]
    %v278 = vld [vmem:[#allocation2 + $0x408] sm:$0xff]
    %v279 = vld [vmem:[#allocation2 + $0x410] sm:$0xf]
    %v280 = vld [vmem:[#allocation2 + $0x414] sm:$0xff]
    %v281 = vld [vmem:[#allocation2 + $0x41c] sm:$0xf]
    %v282 = vld [vmem:[#allocation2 + $0x420] sm:$0xff]
    %v283 = vld [vmem:[#allocation2 + $0x428] sm:$0xf]
    %v284 = vld [vmem:[#allocation2 + $0x42c] sm:$0xff]
    %v285 = vld [vmem:[#allocation2 + $0x434] sm:$0xf]
    %v286 = vld [vmem:[#allocation2 + $0x438] sm:$0xff]
    %v287 = vld [vmem:[#allocation2 + $0x440] sm:$0xf]
    %v288 = vld [vmem:[#allocation2 + $0x444] sm:$0xff]
    %v289 = vld [vmem:[#allocation2 + $0x44c] sm:$0xf]
    %v290 = vld [vmem:[#allocation2 + $0x450] sm:$0xff]
    %v291 = vld [vmem:[#allocation2 + $0x458] sm:$0xf]
    %v292 = vld [vmem:[#allocation2 + $0x45c] sm:$0xff]
    %v293 = vld [vmem:[#allocation2 + $0x464] sm:$0xf]
    %v294 = vld [vmem:[#allocation2 + $0x468] sm:$0xff]
    %v295 = vld [vmem:[#allocation2 + $0x470] sm:$0xf]
    %v296 = vld [vmem:[#allocation2 + $0x474] sm:$0xff]
    %v297 = vld [vmem:[#allocation2 + $0x47c] sm:$0xf]
    %v298 = vld [vmem:[#allocation2 + $0x480] sm:$0xff]
    %v299 = vld [vmem:[#allocation2 + $0x488] sm:$0xf]
    %v300 = vld [vmem:[#allocation2 + $0x48c] sm:$0xff]
    %v301 = vld [vmem:[#allocation2 + $0x494] sm:$0xf]
    %v302 = vld [vmem:[%s2] sm:$0x7]
    %v304 = vlaneseq
    %v305 = vshrl.u32 %v304, 7
    %v306 = vsub.s32 0, %v305
    %v307 = vrot.slane %v302, %v306
    %v308 = vlaneseq
    %v309 = vshrl.u32 %v308, 7
    %v310 = vsub.s32 1, %v309
    %v311 = vrot.slane %v302, %v310
    %v312 = vlaneseq
    %v313 = vshrl.u32 %v312, 7
    %v314 = vsub.s32 2, %v313
    %v315 = vrot.slane %v302, %v314
    %v515 = vunpack.c.l.b16 %v106
    %v516 = vunpack.c.h.b16 %v106
    %v517 = vunpack.c.l.b16 %v107
    %v518 = vunpack.c.l.b16 %v108
    %v519 = vunpack.c.h.b16 %v108
    %v520 = vunpack.c.l.b16 %v109
    %v521 = vunpack.c.l.b16 %v110
    %v522 = vunpack.c.h.b16 %v110
    %v523 = vunpack.c.l.b16 %v111
    %v524 = vunpack.c.l.b16 %v112
    %v525 = vunpack.c.h.b16 %v112
    %v526 = vunpack.c.l.b16 %v113
    %v527 = vunpack.c.l.b16 %v114
    %v528 = vunpack.c.h.b16 %v114
    %v529 = vunpack.c.l.b16 %v115
    %v530 = vunpack.c.l.b16 %v116
    %v531 = vunpack.c.h.b16 %v116
    %v532 = vunpack.c.l.b16 %v117
    %v533 = vunpack.c.l.b16 %v118
    %v534 = vunpack.c.h.b16 %v118
    %v535 = vunpack.c.l.b16 %v119
    %v536 = vunpack.c.l.b16 %v120
    %v537 = vunpack.c.h.b16 %v120
    %v538 = vunpack.c.l.b16 %v121
    %v539 = vunpack.c.l.b16 %v122
    %v540 = vunpack.c.h.b16 %v122
    %v541 = vunpack.c.l.b16 %v123
    %v542 = vunpack.c.l.b16 %v124
    %v543 = vunpack.c.h.b16 %v124
    %v544 = vunpack.c.l.b16 %v125
    %v545 = vunpack.c.l.b16 %v126
    %v546 = vunpack.c.h.b16 %v126
    %v547 = vunpack.c.l.b16 %v127
    %v548 = vunpack.c.l.b16 %v128
    %v549 = vunpack.c.h.b16 %v128
    %v550 = vunpack.c.l.b16 %v129
    %v551 = vunpack.c.l.b16 %v130
    %v552 = vunpack.c.h.b16 %v130
    %v553 = vunpack.c.l.b16 %v131
    %v554 = vunpack.c.l.b16 %v132
    %v555 = vunpack.c.h.b16 %v132
    %v556 = vunpack.c.l.b16 %v133
    %v557 = vunpack.c.l.b16 %v134
    %v558 = vunpack.c.h.b16 %v134
    %v559 = vunpack.c.l.b16 %v135
    %v560 = vunpack.c.l.b16 %v136
    %v561 = vunpack.c.h.b16 %v136
    %v562 = vunpack.c.l.b16 %v137
    %v563 = vunpack.c.l.b16 %v138
    %v564 = vunpack.c.h.b16 %v138
    %v565 = vunpack.c.l.b16 %v139
    %v566 = vunpack.c.l.b16 %v140
    %v567 = vunpack.c.h.b16 %v140
    %v568 = vunpack.c.l.b16 %v141
    %v569 = vunpack.c.l.b16 %v142
    %v570 = vunpack.c.h.b16 %v142
    %v571 = vunpack.c.l.b16 %v143
    %v572 = vunpack.c.l.b16 %v144
    %v573 = vunpack.c.h.b16 %v144
    %v574 = vunpack.c.l.b16 %v145
    %v575 = vunpack.c.l.b16 %v146
    %v576 = vunpack.c.h.b16 %v146
    %v577 = vunpack.c.l.b16 %v147
    %v578 = vunpack.c.l.b16 %v148
    %v579 = vunpack.c.h.b16 %v148
    %v580 = vunpack.c.l.b16 %v149
    %v581 = vunpack.c.l.b16 %v150
    %v582 = vunpack.c.h.b16 %v150
    %v583 = vunpack.c.l.b16 %v151
    %v584 = vunpack.c.l.b16 %v152
    %v585 = vunpack.c.h.b16 %v152
    %v586 = vunpack.c.l.b16 %v153
    %v587 = vunpack.c.l.b16 %v154
    %v588 = vunpack.c.h.b16 %v154
    %v589 = vunpack.c.l.b16 %v155
    %v590 = vunpack.c.l.b16 %v156
    %v591 = vunpack.c.h.b16 %v156
    %v592 = vunpack.c.l.b16 %v157
    %v593 = vunpack.c.l.b16 %v158
    %v594 = vunpack.c.h.b16 %v158
    %v595 = vunpack.c.l.b16 %v159
    %v596 = vunpack.c.l.b16 %v160
    %v597 = vunpack.c.h.b16 %v160
    %v598 = vunpack.c.l.b16 %v161
    %v599 = vunpack.c.l.b16 %v162
    %v600 = vunpack.c.h.b16 %v162
    %v601 = vunpack.c.l.b16 %v163
    %v602 = vunpack.c.l.b16 %v164
    %v603 = vunpack.c.h.b16 %v164
    %v604 = vunpack.c.l.b16 %v165
    %v605 = vunpack.c.l.b16 %v166
    %v606 = vunpack.c.h.b16 %v166
    %v607 = vunpack.c.l.b16 %v167
    %v608 = vunpack.c.l.b16 %v168
    %v609 = vunpack.c.h.b16 %v168
    %v610 = vunpack.c.l.b16 %v169
    %v611 = vunpack.c.l.b16 %v170
    %v612 = vunpack.c.h.b16 %v170
    %v613 = vunpack.c.l.b16 %v171
    %v614 = vunpack.c.l.b16 %v172
    %v615 = vunpack.c.h.b16 %v172
    %v616 = vunpack.c.l.b16 %v173
    %v617 = vunpack.c.l.b16 %v174
    %v618 = vunpack.c.h.b16 %v174
    %v619 = vunpack.c.l.b16 %v175
    %v620 = vunpack.c.l.b16 %v176
    %v621 = vunpack.c.h.b16 %v176
    %v622 = vunpack.c.l.b16 %v177
    %v623 = vunpack.c.l.b16 %v178
    %v624 = vunpack.c.h.b16 %v178
    %v625 = vunpack.c.l.b16 %v179
    %v626 = vunpack.c.l.b16 %v180
    %v627 = vunpack.c.h.b16 %v180
    %v628 = vunpack.c.l.b16 %v181
    %v629 = vunpack.c.l.b16 %v182
    %v630 = vunpack.c.h.b16 %v182
    %v631 = vunpack.c.l.b16 %v183
    %v632 = vunpack.c.l.b16 %v184
    %v633 = vunpack.c.h.b16 %v184
    %v634 = vunpack.c.l.b16 %v185
    %v635 = vunpack.c.l.b16 %v186
    %v636 = vunpack.c.h.b16 %v186
    %v637 = vunpack.c.l.b16 %v187
    %v638 = vunpack.c.l.b16 %v188
    %v639 = vunpack.c.h.b16 %v188
    %v640 = vunpack.c.l.b16 %v189
    %v641 = vunpack.c.l.b16 %v190
    %v642 = vunpack.c.h.b16 %v190
    %v643 = vunpack.c.l.b16 %v191
    %v644 = vunpack.c.l.b16 %v192
    %v645 = vunpack.c.h.b16 %v192
    %v646 = vunpack.c.l.b16 %v193
    %v647 = vunpack.c.l.b16 %v194
    %v648 = vunpack.c.h.b16 %v194
    %v649 = vunpack.c.l.b16 %v195
    %v650 = vunpack.c.l.b16 %v196
    %v651 = vunpack.c.h.b16 %v196
    %v652 = vunpack.c.l.b16 %v197
    %v653 = vunpack.c.l.b16 %v198
    %v654 = vunpack.c.h.b16 %v198
    %v655 = vunpack.c.l.b16 %v199
    %v656 = vunpack.c.l.b16 %v200
    %v657 = vunpack.c.h.b16 %v200
    %v658 = vunpack.c.l.b16 %v201
    %v659 = vunpack.c.l.b16 %v202
    %v660 = vunpack.c.h.b16 %v202
    %v661 = vunpack.c.l.b16 %v203
    %v662 = vunpack.c.l.b16 %v204
    %v663 = vunpack.c.h.b16 %v204
    %v664 = vunpack.c.l.b16 %v205
    %v665 = vunpack.c.l.b16 %v206
    %v666 = vunpack.c.h.b16 %v206
    %v667 = vunpack.c.l.b16 %v207
    %v668 = vunpack.c.l.b16 %v208
    %v669 = vunpack.c.h.b16 %v208
    %v670 = vunpack.c.l.b16 %v209
    %v671 = vunpack.c.l.b16 %v210
    %v672 = vunpack.c.h.b16 %v210
    %v673 = vunpack.c.l.b16 %v211
    %v674 = vunpack.c.l.b16 %v212
    %v675 = vunpack.c.h.b16 %v212
    %v676 = vunpack.c.l.b16 %v213
    %v677 = vunpack.c.l.b16 %v214
    %v678 = vunpack.c.h.b16 %v214
    %v679 = vunpack.c.l.b16 %v215
    %v680 = vunpack.c.l.b16 %v216
    %v681 = vunpack.c.h.b16 %v216
    %v682 = vunpack.c.l.b16 %v217
    %v683 = vunpack.c.l.b16 %v218
    %v684 = vunpack.c.h.b16 %v218
    %v685 = vunpack.c.l.b16 %v219
    %v686 = vunpack.c.l.b16 %v220
    %v687 = vunpack.c.h.b16 %v220
    %v688 = vunpack.c.l.b16 %v221
    %v689 = vunpack.c.l.b16 %v222
    %v690 = vunpack.c.h.b16 %v222
    %v691 = vunpack.c.l.b16 %v223
    %v692 = vunpack.c.l.b16 %v224
    %v693 = vunpack.c.h.b16 %v224
    %v694 = vunpack.c.l.b16 %v225
    %v695 = vunpack.c.l.b16 %v226
    %v696 = vunpack.c.h.b16 %v226
    %v697 = vunpack.c.l.b16 %v227
    %v698 = vunpack.c.l.b16 %v228
    %v699 = vunpack.c.h.b16 %v228
    %v700 = vunpack.c.l.b16 %v229
    %v701 = vunpack.c.l.b16 %v230
    %v702 = vunpack.c.h.b16 %v230
    %v703 = vunpack.c.l.b16 %v231
    %v704 = vunpack.c.l.b16 %v232
    %v705 = vunpack.c.h.b16 %v232
    %v706 = vunpack.c.l.b16 %v233
    %v707 = vunpack.c.l.b16 %v234
    %v708 = vunpack.c.h.b16 %v234
    %v709 = vunpack.c.l.b16 %v235
    %v710 = vunpack.c.l.b16 %v236
    %v711 = vunpack.c.h.b16 %v236
    %v712 = vunpack.c.l.b16 %v237
    %v713 = vunpack.c.l.b16 %v238
    %v714 = vunpack.c.h.b16 %v238
    %v715 = vunpack.c.l.b16 %v239
    %v716 = vunpack.c.l.b16 %v240
    %v717 = vunpack.c.h.b16 %v240
    %v718 = vunpack.c.l.b16 %v241
    %v719 = vunpack.c.l.b16 %v242
    %v720 = vunpack.c.h.b16 %v242
    %v721 = vunpack.c.l.b16 %v243
    %v722 = vunpack.c.l.b16 %v244
    %v723 = vunpack.c.h.b16 %v244
    %v724 = vunpack.c.l.b16 %v245
    %v725 = vunpack.c.l.b16 %v246
    %v726 = vunpack.c.h.b16 %v246
    %v727 = vunpack.c.l.b16 %v247
    %v728 = vunpack.c.l.b16 %v248
    %v729 = vunpack.c.h.b16 %v248
    %v730 = vunpack.c.l.b16 %v249
    %v731 = vunpack.c.l.b16 %v250
    %v732 = vunpack.c.h.b16 %v250
    %v733 = vunpack.c.l.b16 %v251
    %v734 = vunpack.c.l.b16 %v252
    %v735 = vunpack.c.h.b16 %v252
    %v736 = vunpack.c.l.b16 %v253
    %v737 = vunpack.c.l.b16 %v254
    %v738 = vunpack.c.h.b16 %v254
    %v739 = vunpack.c.l.b16 %v255
    %v740 = vunpack.c.l.b16 %v256
    %v741 = vunpack.c.h.b16 %v256
    %v742 = vunpack.c.l.b16 %v257
    %v743 = vunpack.c.l.b16 %v258
    %v744 = vunpack.c.h.b16 %v258
    %v745 = vunpack.c.l.b16 %v259
    %v746 = vunpack.c.l.b16 %v260
    %v747 = vunpack.c.h.b16 %v260
    %v748 = vunpack.c.l.b16 %v261
    %v749 = vunpack.c.l.b16 %v262
    %v750 = vunpack.c.h.b16 %v262
    %v751 = vunpack.c.l.b16 %v263
    %v752 = vunpack.c.l.b16 %v264
    %v753 = vunpack.c.h.b16 %v264
    %v754 = vunpack.c.l.b16 %v265
    %v755 = vunpack.c.l.b16 %v266
    %v756 = vunpack.c.h.b16 %v266
    %v757 = vunpack.c.l.b16 %v267
    %v758 = vunpack.c.l.b16 %v268
    %v759 = vunpack.c.h.b16 %v268
    %v760 = vunpack.c.l.b16 %v269
    %v761 = vunpack.c.l.b16 %v270
    %v762 = vunpack.c.h.b16 %v270
    %v763 = vunpack.c.l.b16 %v271
    %v764 = vunpack.c.l.b16 %v272
    %v765 = vunpack.c.h.b16 %v272
    %v766 = vunpack.c.l.b16 %v273
    %v767 = vunpack.c.l.b16 %v274
    %v768 = vunpack.c.h.b16 %v274
    %v769 = vunpack.c.l.b16 %v275
    %v770 = vunpack.c.l.b16 %v276
    %v771 = vunpack.c.h.b16 %v276
    %v772 = vunpack.c.l.b16 %v277
    %v773 = vunpack.c.l.b16 %v278
    %v774 = vunpack.c.h.b16 %v278
    %v775 = vunpack.c.l.b16 %v279
    %v776 = vunpack.c.l.b16 %v280
    %v777 = vunpack.c.h.b16 %v280
    %v778 = vunpack.c.l.b16 %v281
    %v779 = vunpack.c.l.b16 %v282
    %v780 = vunpack.c.h.b16 %v282
    %v781 = vunpack.c.l.b16 %v283
    %v782 = vunpack.c.l.b16 %v284
    %v783 = vunpack.c.h.b16 %v284
    %v784 = vunpack.c.l.b16 %v285
    %v785 = vunpack.c.l.b16 %v286
    %v786 = vunpack.c.h.b16 %v286
    %v787 = vunpack.c.l.b16 %v287
    %v788 = vunpack.c.l.b16 %v288
    %v789 = vunpack.c.h.b16 %v288
    %v790 = vunpack.c.l.b16 %v289
    %v791 = vunpack.c.l.b16 %v290
    %v792 = vunpack.c.h.b16 %v290
    %v793 = vunpack.c.l.b16 %v291
    %v794 = vunpack.c.l.b16 %v292
    %v795 = vunpack.c.h.b16 %v292
    %v796 = vunpack.c.l.b16 %v293
    %v797 = vunpack.c.l.b16 %v294
    %v798 = vunpack.c.h.b16 %v294
    %v799 = vunpack.c.l.b16 %v295
    %v800 = vunpack.c.l.b16 %v296
    %v801 = vunpack.c.h.b16 %v296
    %v802 = vunpack.c.l.b16 %v297
    %v803 = vunpack.c.l.b16 %v298
    %v804 = vunpack.c.h.b16 %v298
    %v805 = vunpack.c.l.b16 %v299
    %v806 = vunpack.c.l.b16 %v300
    %v807 = vunpack.c.h.b16 %v300
    %v808 = vunpack.c.l.b16 %v301
    %v809 = vpack.c.b16 %v518, %v515
    %v810 = vpack.c.b16 %v519, %v516
    %v811 = vpack.c.b16 %v520, %v517
    %v812 = vpack.c.b16 %v524, %v521
    %v813 = vpack.c.b16 %v525, %v522
    %v814 = vpack.c.b16 %v526, %v523
    %v815 = vpack.c.b16 %v530, %v527
    %v816 = vpack.c.b16 %v531, %v528
    %v817 = vpack.c.b16 %v532, %v529
    %v818 = vpack.c.b16 %v536, %v533
    %v819 = vpack.c.b16 %v537, %v534
    %v820 = vpack.c.b16 %v538, %v535
    %v821 = vpack.c.b16 %v542, %v539
    %v822 = vpack.c.b16 %v543, %v540
    %v823 = vpack.c.b16 %v544, %v541
    %v824 = vpack.c.b16 %v548, %v545
    %v825 = vpack.c.b16 %v549, %v546
    %v826 = vpack.c.b16 %v550, %v547
    %v827 = vpack.c.b16 %v554, %v551
    %v828 = vpack.c.b16 %v555, %v552
    %v829 = vpack.c.b16 %v556, %v553
    %v830 = vpack.c.b16 %v560, %v557
    %v831 = vpack.c.b16 %v561, %v558
    %v832 = vpack.c.b16 %v562, %v559
    %v833 = vpack.c.b16 %v566, %v563
    %v834 = vpack.c.b16 %v567, %v564
    %v835 = vpack.c.b16 %v568, %v565
    %v836 = vpack.c.b16 %v572, %v569
    %v837 = vpack.c.b16 %v573, %v570
    %v838 = vpack.c.b16 %v574, %v571
    %v839 = vpack.c.b16 %v578, %v575
    %v840 = vpack.c.b16 %v579, %v576
    %v841 = vpack.c.b16 %v580, %v577
    %v842 = vpack.c.b16 %v584, %v581
    %v843 = vpack.c.b16 %v585, %v582
    %v844 = vpack.c.b16 %v586, %v583
    %v845 = vpack.c.b16 %v590, %v587
    %v846 = vpack.c.b16 %v591, %v588
    %v847 = vpack.c.b16 %v592, %v589
    %v848 = vpack.c.b16 %v596, %v593
    %v849 = vpack.c.b16 %v597, %v594
    %v850 = vpack.c.b16 %v598, %v595
    %v851 = vpack.c.b16 %v602, %v599
    %v852 = vpack.c.b16 %v603, %v600
    %v853 = vpack.c.b16 %v604, %v601
    %v854 = vpack.c.b16 %v608, %v605
    %v855 = vpack.c.b16 %v609, %v606
    %v856 = vpack.c.b16 %v610, %v607
    %v857 = vpack.c.b16 %v614, %v611
    %v858 = vpack.c.b16 %v615, %v612
    %v859 = vpack.c.b16 %v616, %v613
    %v860 = vpack.c.b16 %v620, %v617
    %v861 = vpack.c.b16 %v621, %v618
    %v862 = vpack.c.b16 %v622, %v619
    %v863 = vpack.c.b16 %v626, %v623
    %v864 = vpack.c.b16 %v627, %v624
    %v865 = vpack.c.b16 %v628, %v625
    %v866 = vpack.c.b16 %v632, %v629
    %v867 = vpack.c.b16 %v633, %v630
    %v868 = vpack.c.b16 %v634, %v631
    %v869 = vpack.c.b16 %v638, %v635
    %v870 = vpack.c.b16 %v639, %v636
    %v871 = vpack.c.b16 %v640, %v637
    %v872 = vpack.c.b16 %v644, %v641
    %v873 = vpack.c.b16 %v645, %v642
    %v874 = vpack.c.b16 %v646, %v643
    %v875 = vpack.c.b16 %v650, %v647
    %v876 = vpack.c.b16 %v651, %v648
    %v877 = vpack.c.b16 %v652, %v649
    %v878 = vpack.c.b16 %v656, %v653
    %v879 = vpack.c.b16 %v657, %v654
    %v880 = vpack.c.b16 %v658, %v655
    %v881 = vpack.c.b16 %v662, %v659
    %v882 = vpack.c.b16 %v663, %v660
    %v883 = vpack.c.b16 %v664, %v661
    %v884 = vpack.c.b16 %v668, %v665
    %v885 = vpack.c.b16 %v669, %v666
    %v886 = vpack.c.b16 %v670, %v667
    %v887 = vpack.c.b16 %v674, %v671
    %v888 = vpack.c.b16 %v675, %v672
    %v889 = vpack.c.b16 %v676, %v673
    %v890 = vpack.c.b16 %v680, %v677
    %v891 = vpack.c.b16 %v681, %v678
    %v892 = vpack.c.b16 %v682, %v679
    %v893 = vpack.c.b16 %v686, %v683
    %v894 = vpack.c.b16 %v687, %v684
    %v895 = vpack.c.b16 %v688, %v685
    %v896 = vpack.c.b16 %v692, %v689
    %v897 = vpack.c.b16 %v693, %v690
    %v898 = vpack.c.b16 %v694, %v691
    %v899 = vpack.c.b16 %v698, %v695
    %v900 = vpack.c.b16 %v699, %v696
    %v901 = vpack.c.b16 %v700, %v697
    %v902 = vpack.c.b16 %v704, %v701
    %v903 = vpack.c.b16 %v705, %v702
    %v904 = vpack.c.b16 %v706, %v703
    %v905 = vpack.c.b16 %v710, %v707
    %v906 = vpack.c.b16 %v711, %v708
    %v907 = vpack.c.b16 %v712, %v709
    %v908 = vpack.c.b16 %v716, %v713
    %v909 = vpack.c.b16 %v717, %v714
    %v910 = vpack.c.b16 %v718, %v715
    %v911 = vpack.c.b16 %v722, %v719
    %v912 = vpack.c.b16 %v723, %v720
    %v913 = vpack.c.b16 %v724, %v721
    %v914 = vpack.c.b16 %v728, %v725
    %v915 = vpack.c.b16 %v729, %v726
    %v916 = vpack.c.b16 %v730, %v727
    %v917 = vpack.c.b16 %v734, %v731
    %v918 = vpack.c.b16 %v735, %v732
    %v919 = vpack.c.b16 %v736, %v733
    %v920 = vpack.c.b16 %v740, %v737
    %v921 = vpack.c.b16 %v741, %v738
    %v922 = vpack.c.b16 %v742, %v739
    %v923 = vpack.c.b16 %v746, %v743
    %v924 = vpack.c.b16 %v747, %v744
    %v925 = vpack.c.b16 %v748, %v745
    %v926 = vpack.c.b16 %v752, %v749
    %v927 = vpack.c.b16 %v753, %v750
    %v928 = vpack.c.b16 %v754, %v751
    %v929 = vpack.c.b16 %v758, %v755
    %v930 = vpack.c.b16 %v759, %v756
    %v931 = vpack.c.b16 %v760, %v757
    %v932 = vpack.c.b16 %v764, %v761
    %v933 = vpack.c.b16 %v765, %v762
    %v934 = vpack.c.b16 %v766, %v763
    %v935 = vpack.c.b16 %v770, %v767
    %v936 = vpack.c.b16 %v771, %v768
    %v937 = vpack.c.b16 %v772, %v769
    %v938 = vpack.c.b16 %v776, %v773
    %v939 = vpack.c.b16 %v777, %v774
    %v940 = vpack.c.b16 %v778, %v775
    %v941 = vpack.c.b16 %v782, %v779
    %v942 = vpack.c.b16 %v783, %v780
    %v943 = vpack.c.b16 %v784, %v781
    %v944 = vpack.c.b16 %v788, %v785
    %v945 = vpack.c.b16 %v789, %v786
    %v946 = vpack.c.b16 %v790, %v787
    %v947 = vpack.c.b16 %v794, %v791
    %v948 = vpack.c.b16 %v795, %v792
    %v949 = vpack.c.b16 %v796, %v793
    %v950 = vpack.c.b16 %v800, %v797
    %v951 = vpack.c.b16 %v801, %v798
    %v952 = vpack.c.b16 %v802, %v799
    %v953 = vpack.c.b16 %v806, %v803
    %v954 = vpack.c.b16 %v807, %v804
    %v955 = vpack.c.b16 %v808, %v805
    %vm1103 = vcmask 130048
    %v1105 = vsel %vm1103, %v105, 0
    %1107 = vmatprep.subr.bf16.mxu0 %v831
    %1108 = vmatpush1.bf16.msra.mxu0 %v830
    %1109 = vmatprep.subr.bf16.mxu0 %v828
    %1110 = vmatpush1.bf16.msra.mxu0 %v827
    %1111 = vmatprep.subr.bf16.mxu0 %v825
    %1112 = vmatpush1.bf16.msra.mxu0 %v824
    %1113 = vmatprep.subr.bf16.mxu0 %v822
    %1114 = vmatpush1.bf16.msra.mxu0 %v821
    %1115 = vmatprep.subr.bf16.mxu0 %v819
    %1116 = vmatpush1.bf16.msra.mxu0 %v818
    %1117 = vmatprep.subr.bf16.mxu0 %v816
    %1118 = vmatpush1.bf16.msra.mxu0 %v815
    %1119 = vmatprep.subr.bf16.mxu0 %v813
    %1120 = vmatpush1.bf16.msra.mxu0 %v812
    %1121 = vmatprep.subr.bf16.mxu0 %v810
    %1122 = vmatpush1.bf16.msra.mxu0 %v809
    %1123 = vmatprep.subr.bf16.mxu0 %v855
    %1124 = vmatpush2.bf16.msra.mxu0 %v854
    %1125 = vmatprep.subr.bf16.mxu0 %v852
    %1126 = vmatpush2.bf16.msra.mxu0 %v851
    %1127 = vmatprep.subr.bf16.mxu0 %v849
    %1128 = vmatpush2.bf16.msra.mxu0 %v848
    %1129 = vmatprep.subr.bf16.mxu0 %v846
    %1130 = vmatpush2.bf16.msra.mxu0 %v845
    %1131 = vmatprep.subr.bf16.mxu0 %v843
    %1132 = vmatpush2.bf16.msra.mxu0 %v842
    %1133 = vmatprep.subr.bf16.mxu0 %v840
    %1134 = vmatpush2.bf16.msra.mxu0 %v839
    %1135 = vmatprep.subr.bf16.mxu0 %v837
    %1136 = vmatpush2.bf16.msra.mxu0 %v836
    %1137 = vmatprep.subr.bf16.mxu0 %v834
    %1138 = vmatpush2.bf16.msra.mxu0 %v833
    %1139 = vmatprep.mubr.bf16.mxu0 %v100
    %1140 = vmatmul.mubr.bf16.gmra.mxu0 %v99
    %v1141 = vpop.f32.mrf.mxu0
    %v1142 = vadd.f32 %v307, %v1141
    %v1143 = vpop.f32.mrf.mxu0
    %v1144 = vadd.f32 %v311, %v1143
    %v1145 = vpop.f32.mrf.mxu0
    %v1146 = vpop.f32.mrf.mxu0
    %1147 = vdwg.mxu0
    %1148 = vmatprep.subr.bf16.mxu0 %v879
    %1149 = vmatpush1.bf16.msra.mxu0 %v878
    %1150 = vmatprep.subr.bf16.mxu0 %v876
    %1151 = vmatpush1.bf16.msra.mxu0 %v875
    %1152 = vmatprep.subr.bf16.mxu0 %v873
    %1153 = vmatpush1.bf16.msra.mxu0 %v872
    %1154 = vmatprep.subr.bf16.mxu0 %v870
    %1155 = vmatpush1.bf16.msra.mxu0 %v869
    %1156 = vmatprep.subr.bf16.mxu0 %v867
    %1157 = vmatpush1.bf16.msra.mxu0 %v866
    %1158 = vmatprep.subr.bf16.mxu0 %v864
    %1159 = vmatpush1.bf16.msra.mxu0 %v863
    %1160 = vmatprep.subr.bf16.mxu0 %v861
    %1161 = vmatpush1.bf16.msra.mxu0 %v860
    %1162 = vmatprep.subr.bf16.mxu0 %v858
    %1163 = vmatpush1.bf16.msra.mxu0 %v857
    %1164 = vmatprep.subr.bf16.mxu0 %v903
    %1165 = vmatpush2.bf16.msra.mxu0 %v902
    %1166 = vmatprep.subr.bf16.mxu0 %v900
    %1167 = vmatpush2.bf16.msra.mxu0 %v899
    %1168 = vmatprep.subr.bf16.mxu0 %v897
    %1169 = vmatpush2.bf16.msra.mxu0 %v896
    %1170 = vmatprep.subr.bf16.mxu0 %v894
    %1171 = vmatpush2.bf16.msra.mxu0 %v893
    %1172 = vmatprep.subr.bf16.mxu0 %v891
    %1173 = vmatpush2.bf16.msra.mxu0 %v890
    %1174 = vmatprep.subr.bf16.mxu0 %v888
    %1175 = vmatpush2.bf16.msra.mxu0 %v887
    %1176 = vmatprep.subr.bf16.mxu0 %v885
    %1177 = vmatpush2.bf16.msra.mxu0 %v884
    %1178 = vmatprep.subr.bf16.mxu0 %v882
    %1179 = vmatpush2.bf16.msra.mxu0 %v881
    %1180 = vmatprep.mubr.bf16.mxu0 %v102
    %1181 = vmatmul.mubr.bf16.gmra.mxu0 %v101
    %v1182 = vpop.f32.mrf.mxu0
    %v1183 = vadd.f32 %v1142, %v1182
    %v1184 = vpop.f32.mrf.mxu0
    %v1185 = vadd.f32 %v1144, %v1184
    %v1186 = vpop.f32.mrf.mxu0
    %v1187 = vpop.f32.mrf.mxu0
    %1188 = vdwg.mxu0
    %1189 = vmatprep.subr.bf16.mxu0 %v927
    %1190 = vmatpush1.bf16.msra.mxu0 %v926
    %1191 = vmatprep.subr.bf16.mxu0 %v924
    %1192 = vmatpush1.bf16.msra.mxu0 %v923
    %1193 = vmatprep.subr.bf16.mxu0 %v921
    %1194 = vmatpush1.bf16.msra.mxu0 %v920
    %1195 = vmatprep.subr.bf16.mxu0 %v918
    %1196 = vmatpush1.bf16.msra.mxu0 %v917
    %1197 = vmatprep.subr.bf16.mxu0 %v915
    %1198 = vmatpush1.bf16.msra.mxu0 %v914
    %1199 = vmatprep.subr.bf16.mxu0 %v912
    %1200 = vmatpush1.bf16.msra.mxu0 %v911
    %1201 = vmatprep.subr.bf16.mxu0 %v909
    %1202 = vmatpush1.bf16.msra.mxu0 %v908
    %1203 = vmatprep.subr.bf16.mxu0 %v906
    %1204 = vmatpush1.bf16.msra.mxu0 %v905
    %1205 = vmatprep.subr.bf16.mxu0 %v951
    %1206 = vmatpush2.bf16.msra.mxu0 %v950
    %1207 = vmatprep.subr.bf16.mxu0 %v948
    %1208 = vmatpush2.bf16.msra.mxu0 %v947
    %1209 = vmatprep.subr.bf16.mxu0 %v945
    %1210 = vmatpush2.bf16.msra.mxu0 %v944
    %1211 = vmatprep.subr.bf16.mxu0 %v942
    %1212 = vmatpush2.bf16.msra.mxu0 %v941
    %1213 = vmatprep.subr.bf16.mxu0 %v939
    %1214 = vmatpush2.bf16.msra.mxu0 %v938
    %1215 = vmatprep.subr.bf16.mxu0 %v936
    %1216 = vmatpush2.bf16.msra.mxu0 %v935
    %1217 = vmatprep.subr.bf16.mxu0 %v933
    %1218 = vmatpush2.bf16.msra.mxu0 %v932
    %1219 = vmatprep.subr.bf16.mxu0 %v930
    %1220 = vmatpush2.bf16.msra.mxu0 %v929
    %1221 = vmatprep.mubr.bf16.mxu0 %v104
    %1222 = vmatmul.mubr.bf16.gmra.mxu0 %v103
    %v1223 = vpop.f32.mrf.mxu0
    %v1224 = vadd.f32 %v1183, %v1223
    %v1225 = vpop.f32.mrf.mxu0
    %v1226 = vadd.f32 %v1185, %v1225
    %v1227 = vpop.f32.mrf.mxu0
    %v1228 = vpop.f32.mrf.mxu0
    %1229 = vdwg.mxu0
    %1230 = vmatprep.subr.bf16.mxu0 0
    %1231 = vmatpush1.bf16.msra.mxu0 0
    %1232 = vmatprep.subr.bf16.mxu0 0
    %1233 = vmatpush1.bf16.msra.mxu0 0
    %1234 = vmatprep.subr.bf16.mxu0 0
    %1235 = vmatpush1.bf16.msra.mxu0 0
    %1236 = vmatprep.subr.bf16.mxu0 0
    %1237 = vmatpush1.bf16.msra.mxu0 0
    %1238 = vmatprep.subr.bf16.mxu0 0
    %1239 = vmatpush1.bf16.msra.mxu0 0
    %1240 = vmatprep.subr.bf16.mxu0 0
    %1241 = vmatpush1.bf16.msra.mxu0 0
    %1242 = vmatprep.subr.bf16.mxu0 0
    %1243 = vmatpush1.bf16.msra.mxu0 0
    %1244 = vmatprep.subr.bf16.mxu0 %v954
    %1245 = vmatpush1.bf16.msra.mxu0 %v953
    %1246 = vmatprep.subr.bf16.mxu0 0
    %1247 = vmatpush2.bf16.msra.mxu0 0
    %1248 = vmatprep.subr.bf16.mxu0 0
    %1249 = vmatpush2.bf16.msra.mxu0 0
    %1250 = vmatprep.subr.bf16.mxu0 0
    %1251 = vmatpush2.bf16.msra.mxu0 0
    %1252 = vmatprep.subr.bf16.mxu0 0
    %1253 = vmatpush2.bf16.msra.mxu0 0
    %1254 = vmatprep.subr.bf16.mxu0 0
    %1255 = vmatpush2.bf16.msra.mxu0 0
    %1256 = vmatprep.subr.bf16.mxu0 0
    %1257 = vmatpush2.bf16.msra.mxu0 0
    %1258 = vmatprep.subr.bf16.mxu0 0
    %1259 = vmatpush2.bf16.msra.mxu0 0
    %1260 = vmatprep.subr.bf16.mxu0 0
    %1261 = vmatpush2.bf16.msra.mxu0 0
    %1262 = vmatprep.mubr.bf16.mxu0 0
    %1263 = vmatmul.mubr.bf16.gmra.mxu0 %v1105
    %v1264 = vpop.f32.mrf.mxu0
    %v1265 = vadd.f32 %v1224, %v1264
    %v1266 = vpop.f32.mrf.mxu0
    %v1267 = vadd.f32 %v1226, %v1266
    %v1268 = vpop.f32.mrf.mxu0
    %v1269 = vpop.f32.mrf.mxu0
    %1270 = vdwg.mxu0
    %1271 = vmatprep.subr.bf16.mxu0 0
    %1272 = vmatpush1.bf16.msra.mxu0 %v832
    %1273 = vmatprep.subr.bf16.mxu0 0
    %1274 = vmatpush1.bf16.msra.mxu0 %v829
    %1275 = vmatprep.subr.bf16.mxu0 0
    %1276 = vmatpush1.bf16.msra.mxu0 %v826
    %1277 = vmatprep.subr.bf16.mxu0 0
    %1278 = vmatpush1.bf16.msra.mxu0 %v823
    %1279 = vmatprep.subr.bf16.mxu0 0
    %1280 = vmatpush1.bf16.msra.mxu0 %v820
    %1281 = vmatprep.subr.bf16.mxu0 0
    %1282 = vmatpush1.bf16.msra.mxu0 %v817
    %1283 = vmatprep.subr.bf16.mxu0 0
    %1284 = vmatpush1.bf16.msra.mxu0 %v814
    %1285 = vmatprep.subr.bf16.mxu0 0
    %1286 = vmatpush1.bf16.msra.mxu0 %v811
    %1287 = vmatprep.subr.bf16.mxu0 0
    %1288 = vmatpush2.bf16.msra.mxu0 %v856
    %1289 = vmatprep.subr.bf16.mxu0 0
    %1290 = vmatpush2.bf16.msra.mxu0 %v853
    %1291 = vmatprep.subr.bf16.mxu0 0
    %1292 = vmatpush2.bf16.msra.mxu0 %v850
    %1293 = vmatprep.subr.bf16.mxu0 0
    %1294 = vmatpush2.bf16.msra.mxu0 %v847
    %1295 = vmatprep.subr.bf16.mxu0 0
    %1296 = vmatpush2.bf16.msra.mxu0 %v844
    %1297 = vmatprep.subr.bf16.mxu0 0
    %1298 = vmatpush2.bf16.msra.mxu0 %v841
    %1299 = vmatprep.subr.bf16.mxu0 0
    %1300 = vmatpush2.bf16.msra.mxu0 %v838
    %1301 = vmatprep.subr.bf16.mxu0 0
    %1302 = vmatpush2.bf16.msra.mxu0 %v835
    %1303 = vmatprep.mubr.bf16.mxu0 %v100
    %1304 = vmatmul.mubr.bf16.gmra.mxu0 %v99
    %v1305 = vpop.f32.mrf.mxu0
    %v1306 = vadd.f32 %v315, %v1305
    %v1307 = vpop.f32.mrf.mxu0
    %v1308 = vpop.f32.mrf.mxu0
    %v1309 = vpop.f32.mrf.mxu0
    %1310 = vdwg.mxu0
    %1311 = vmatprep.subr.bf16.mxu0 0
    %1312 = vmatpush1.bf16.msra.mxu0 %v880
    %1313 = vmatprep.subr.bf16.mxu0 0
    %1314 = vmatpush1.bf16.msra.mxu0 %v877
    %1315 = vmatprep.subr.bf16.mxu0 0
    %1316 = vmatpush1.bf16.msra.mxu0 %v874
    %1317 = vmatprep.subr.bf16.mxu0 0
    %1318 = vmatpush1.bf16.msra.mxu0 %v871
    %1319 = vmatprep.subr.bf16.mxu0 0
    %1320 = vmatpush1.bf16.msra.mxu0 %v868
    %1321 = vmatprep.subr.bf16.mxu0 0
    %1322 = vmatpush1.bf16.msra.mxu0 %v865
    %1323 = vmatprep.subr.bf16.mxu0 0
    %1324 = vmatpush1.bf16.msra.mxu0 %v862
    %1325 = vmatprep.subr.bf16.mxu0 0
    %1326 = vmatpush1.bf16.msra.mxu0 %v859
    %1327 = vmatprep.subr.bf16.mxu0 0
    %1328 = vmatpush2.bf16.msra.mxu0 %v904
    %1329 = vmatprep.subr.bf16.mxu0 0
    %1330 = vmatpush2.bf16.msra.mxu0 %v901
    %1331 = vmatprep.subr.bf16.mxu0 0
    %1332 = vmatpush2.bf16.msra.mxu0 %v898
    %1333 = vmatprep.subr.bf16.mxu0 0
    %1334 = vmatpush2.bf16.msra.mxu0 %v895
    %1335 = vmatprep.subr.bf16.mxu0 0
    %1336 = vmatpush2.bf16.msra.mxu0 %v892
    %1337 = vmatprep.subr.bf16.mxu0 0
    %1338 = vmatpush2.bf16.msra.mxu0 %v889
    %1339 = vmatprep.subr.bf16.mxu0 0
    %1340 = vmatpush2.bf16.msra.mxu0 %v886
    %1341 = vmatprep.subr.bf16.mxu0 0
    %1342 = vmatpush2.bf16.msra.mxu0 %v883
    %1343 = vmatprep.mubr.bf16.mxu0 %v102
    %1344 = vmatmul.mubr.bf16.gmra.mxu0 %v101
    %v1345 = vpop.f32.mrf.mxu0
    %v1346 = vadd.f32 %v1306, %v1345
    %v1347 = vpop.f32.mrf.mxu0
    %v1348 = vpop.f32.mrf.mxu0
    %v1349 = vpop.f32.mrf.mxu0
    %1350 = vdwg.mxu0
    %1351 = vmatprep.subr.bf16.mxu0 0
    %1352 = vmatpush1.bf16.msra.mxu0 %v928
    %1353 = vmatprep.subr.bf16.mxu0 0
    %1354 = vmatpush1.bf16.msra.mxu0 %v925
    %1355 = vmatprep.subr.bf16.mxu0 0
    %1356 = vmatpush1.bf16.msra.mxu0 %v922
    %1357 = vmatprep.subr.bf16.mxu0 0
    %1358 = vmatpush1.bf16.msra.mxu0 %v919
    %1359 = vmatprep.subr.bf16.mxu0 0
    %1360 = vmatpush1.bf16.msra.mxu0 %v916
    %1361 = vmatprep.subr.bf16.mxu0 0
    %1362 = vmatpush1.bf16.msra.mxu0 %v913
    %1363 = vmatprep.subr.bf16.mxu0 0
    %1364 = vmatpush1.bf16.msra.mxu0 %v910
    %1365 = vmatprep.subr.bf16.mxu0 0
    %1366 = vmatpush1.bf16.msra.mxu0 %v907
    %1367 = vmatprep.subr.bf16.mxu0 0
    %1368 = vmatpush2.bf16.msra.mxu0 %v952
    %1369 = vmatprep.subr.bf16.mxu0 0
    %1370 = vmatpush2.bf16.msra.mxu0 %v949
    %1371 = vmatprep.subr.bf16.mxu0 0
    %1372 = vmatpush2.bf16.msra.mxu0 %v946
    %1373 = vmatprep.subr.bf16.mxu0 0
    %1374 = vmatpush2.bf16.msra.mxu0 %v943
    %1375 = vmatprep.subr.bf16.mxu0 0
    %1376 = vmatpush2.bf16.msra.mxu0 %v940
    %1377 = vmatprep.subr.bf16.mxu0 0
    %1378 = vmatpush2.bf16.msra.mxu0 %v937
    %1379 = vmatprep.subr.bf16.mxu0 0
    %1380 = vmatpush2.bf16.msra.mxu0 %v934
    %1381 = vmatprep.subr.bf16.mxu0 0
    %1382 = vmatpush2.bf16.msra.mxu0 %v931
    %1383 = vmatprep.mubr.bf16.mxu0 %v104
    %1384 = vmatmul.mubr.bf16.gmra.mxu0 %v103
    %v1385 = vpop.f32.mrf.mxu0
    %v1386 = vadd.f32 %v1346, %v1385
    %v1387 = vpop.f32.mrf.mxu0
    %v1388 = vpop.f32.mrf.mxu0
    %v1389 = vpop.f32.mrf.mxu0
    %1390 = vdwg.mxu0
    %1391 = vmatprep.subr.bf16.mxu0 0
    %1392 = vmatpush1.bf16.msra.mxu0 0
    %1393 = vmatprep.subr.bf16.mxu0 0
    %1394 = vmatpush1.bf16.msra.mxu0 0
    %1395 = vmatprep.subr.bf16.mxu0 0
    %1396 = vmatpush1.bf16.msra.mxu0 0
    %1397 = vmatprep.subr.bf16.mxu0 0
    %1398 = vmatpush1.bf16.msra.mxu0 0
    %1399 = vmatprep.subr.bf16.mxu0 0
    %1400 = vmatpush1.bf16.msra.mxu0 0
    %1401 = vmatprep.subr.bf16.mxu0 0
    %1402 = vmatpush1.bf16.msra.mxu0 0
    %1403 = vmatprep.subr.bf16.mxu0 0
    %1404 = vmatpush1.bf16.msra.mxu0 0
    %1405 = vmatprep.subr.bf16.mxu0 0
    %1406 = vmatpush1.bf16.msra.mxu0 %v955
    %1407 = vmatprep.subr.bf16.mxu0 0
    %1408 = vmatpush2.bf16.msra.mxu0 0
    %1409 = vmatprep.subr.bf16.mxu0 0
    %1410 = vmatpush2.bf16.msra.mxu0 0
    %1411 = vmatprep.subr.bf16.mxu0 0
    %1412 = vmatpush2.bf16.msra.mxu0 0
    %1413 = vmatprep.subr.bf16.mxu0 0
    %1414 = vmatpush2.bf16.msra.mxu0 0
    %1415 = vmatprep.subr.bf16.mxu0 0
    %1416 = vmatpush2.bf16.msra.mxu0 0
    %1417 = vmatprep.subr.bf16.mxu0 0
    %1418 = vmatpush2.bf16.msra.mxu0 0
    %1419 = vmatprep.subr.bf16.mxu0 0
    %1420 = vmatpush2.bf16.msra.mxu0 0
    %1421 = vmatprep.subr.bf16.mxu0 0
    %1422 = vmatpush2.bf16.msra.mxu0 0
    %1423 = vmatprep.mubr.bf16.mxu0 0
    %1424 = vmatmul.mubr.bf16.gmra.mxu0 %v1105
    %v1425 = vpop.f32.mrf.mxu0
    %v1426 = vadd.f32 %v1386, %v1425
    %v1427 = vpop.f32.mrf.mxu0
    %v1428 = vpop.f32.mrf.mxu0
    %v1429 = vpop.f32.mrf.mxu0
    %1430 = vdwg.mxu0
    %v1431 = vmax.f32 %v1265, 0.0
    %v1432 = vmax.f32 %v1267, 0.0
    %v1433 = vmax.f32 %v1426, 0.0
    %v1434 = vpack.c.bf16 %v1431, %v1431
    %v1435 = vpack.c.bf16 %v1432, %v1432
    %v1436 = vpack.c.bf16 %v1433, %v1433
    %v1437 = vld [vmem:[%s3] sm:$0xf]
    %v1438 = vld [vmem:[%s3 + $0x4] sm:$0xf]
    %v1439 = vld [vmem:[%s3 + $0x8] sm:$0xf]
    %v1440 = vld [vmem:[%s3 + $0xc] sm:$0xf]
    %v1441 = vld [vmem:[%s3 + $0x10] sm:$0xf]
    %v1442 = vld [vmem:[%s3 + $0x14] sm:$0xf]
    %v1443 = vld [vmem:[%s3 + $0x18] sm:$0xf]
    %v1444 = vld [vmem:[%s3 + $0x1c] sm:$0xf]
    %v1445 = vld [vmem:[%s3 + $0x20] sm:$0xf]
    %v1446 = vld [vmem:[%s3 + $0x24] sm:$0xf]
    %v1447 = vld [vmem:[%s3 + $0x28] sm:$0xf]
    %v1448 = vld [vmem:[%s3 + $0x2c] sm:$0xf]
    %v1449 = vld [vmem:[%s3 + $0x30] sm:$0xf]
    %v1450 = vld [vmem:[%s3 + $0x34] sm:$0xf]
    %v1451 = vld [vmem:[%s3 + $0x38] sm:$0xf]
    %v1452 = vld [vmem:[%s3 + $0x3c] sm:$0xf]
    %v1453 = vld [vmem:[%s3 + $0x40] sm:$0xf]
    %v1454 = vld [vmem:[%s3 + $0x44] sm:$0xf]
    %v1455 = vld [vmem:[%s3 + $0x48] sm:$0xf]
    %v1456 = vld [vmem:[%s3 + $0x4c] sm:$0xf]
    %v1457 = vld [vmem:[%s3 + $0x50] sm:$0xf]
    %v1458 = vld [vmem:[%s3 + $0x54] sm:$0xf]
    %v1459 = vld [vmem:[%s3 + $0x58] sm:$0xf]
    %v1460 = vld [vmem:[%s3 + $0x5c] sm:$0xf]
    %v1461 = vld [vmem:[%s3 + $0x60] sm:$0xf]
    %v1462 = vld [vmem:[%s3 + $0x64] sm:$0xf]
    %v1463 = vld [vmem:[%s3 + $0x68] sm:$0xf]
    %v1464 = vld [vmem:[%s3 + $0x6c] sm:$0xf]
    %v1465 = vld [vmem:[%s3 + $0x70] sm:$0xf]
    %v1466 = vld [vmem:[%s3 + $0x74] sm:$0xf]
    %v1467 = vld [vmem:[%s3 + $0x78] sm:$0xf]
    %v1468 = vld [vmem:[%s3 + $0x7c] sm:$0xf]
    %v1469 = vld [vmem:[%s3 + $0x80] sm:$0xf]
    %v1470 = vld [vmem:[%s3 + $0x84] sm:$0xf]
    %v1471 = vld [vmem:[%s3 + $0x88] sm:$0xf]
    %v1472 = vld [vmem:[%s3 + $0x8c] sm:$0xf]
    %v1473 = vld [vmem:[%s3 + $0x90] sm:$0xf]
    %v1474 = vld [vmem:[%s3 + $0x94] sm:$0xf]
    %v1475 = vld [vmem:[%s3 + $0x98] sm:$0xf]
    %v1476 = vld [vmem:[%s3 + $0x9c] sm:$0xf]
    %v1477 = vld [vmem:[%s3 + $0xa0] sm:$0xf]
    %v1478 = vld [vmem:[%s3 + $0xa4] sm:$0xf]
    %v1479 = vld [vmem:[%s3 + $0xa8] sm:$0xf]
    %v1480 = vld [vmem:[%s3 + $0xac] sm:$0xf]
    %v1481 = vld [vmem:[%s3 + $0xb0] sm:$0xf]
    %v1482 = vld [vmem:[%s3 + $0xb4] sm:$0xf]
    %v1483 = vld [vmem:[%s3 + $0xb8] sm:$0xf]
    %v1484 = vld [vmem:[%s3 + $0xbc] sm:$0xf]
    %v1485 = vld [vmem:[%s4] sm:$0x1]
    %v1487 = vlaneseq
    %v1488 = vshrl.u32 %v1487, 7
    %v1489 = vsub.s32 0, %v1488
    %v1490 = vrot.slane %v1485, %v1489
    %v1540 = vunpack.c.l.b16 %v1437
    %v1541 = vunpack.c.l.b16 %v1438
    %v1542 = vunpack.c.l.b16 %v1439
    %v1543 = vunpack.c.l.b16 %v1440
    %v1544 = vunpack.c.l.b16 %v1441
    %v1545 = vunpack.c.l.b16 %v1442
    %v1546 = vunpack.c.l.b16 %v1443
    %v1547 = vunpack.c.l.b16 %v1444
    %v1548 = vunpack.c.l.b16 %v1445
    %v1549 = vunpack.c.l.b16 %v1446
    %v1550 = vunpack.c.l.b16 %v1447
    %v1551 = vunpack.c.l.b16 %v1448
    %v1552 = vunpack.c.l.b16 %v1449
    %v1553 = vunpack.c.l.b16 %v1450
    %v1554 = vunpack.c.l.b16 %v1451
    %v1555 = vunpack.c.l.b16 %v1452
    %v1556 = vunpack.c.l.b16 %v1453
    %v1557 = vunpack.c.l.b16 %v1454
    %v1558 = vunpack.c.l.b16 %v1455
    %v1559 = vunpack.c.l.b16 %v1456
    %v1560 = vunpack.c.l.b16 %v1457
    %v1561 = vunpack.c.l.b16 %v1458
    %v1562 = vunpack.c.l.b16 %v1459
    %v1563 = vunpack.c.l.b16 %v1460
    %v1564 = vunpack.c.l.b16 %v1461
    %v1565 = vunpack.c.l.b16 %v1462
    %v1566 = vunpack.c.l.b16 %v1463
    %v1567 = vunpack.c.l.b16 %v1464
    %v1568 = vunpack.c.l.b16 %v1465
    %v1569 = vunpack.c.l.b16 %v1466
    %v1570 = vunpack.c.l.b16 %v1467
    %v1571 = vunpack.c.l.b16 %v1468
    %v1572 = vunpack.c.l.b16 %v1469
    %v1573 = vunpack.c.l.b16 %v1470
    %v1574 = vunpack.c.l.b16 %v1471
    %v1575 = vunpack.c.l.b16 %v1472
    %v1576 = vunpack.c.l.b16 %v1473
    %v1577 = vunpack.c.l.b16 %v1474
    %v1578 = vunpack.c.l.b16 %v1475
    %v1579 = vunpack.c.l.b16 %v1476
    %v1580 = vunpack.c.l.b16 %v1477
    %v1581 = vunpack.c.l.b16 %v1478
    %v1582 = vunpack.c.l.b16 %v1479
    %v1583 = vunpack.c.l.b16 %v1480
    %v1584 = vunpack.c.l.b16 %v1481
    %v1585 = vunpack.c.l.b16 %v1482
    %v1586 = vunpack.c.l.b16 %v1483
    %v1587 = vunpack.c.l.b16 %v1484
    %v1588 = vpack.c.b16 %v1541, %v1540
    %v1589 = vpack.c.b16 %v1543, %v1542
    %v1590 = vpack.c.b16 %v1545, %v1544
    %v1591 = vpack.c.b16 %v1547, %v1546
    %v1592 = vpack.c.b16 %v1549, %v1548
    %v1593 = vpack.c.b16 %v1551, %v1550
    %v1594 = vpack.c.b16 %v1553, %v1552
    %v1595 = vpack.c.b16 %v1555, %v1554
    %v1596 = vpack.c.b16 %v1557, %v1556
    %v1597 = vpack.c.b16 %v1559, %v1558
    %v1598 = vpack.c.b16 %v1561, %v1560
    %v1599 = vpack.c.b16 %v1563, %v1562
    %v1600 = vpack.c.b16 %v1565, %v1564
    %v1601 = vpack.c.b16 %v1567, %v1566
    %v1602 = vpack.c.b16 %v1569, %v1568
    %v1603 = vpack.c.b16 %v1571, %v1570
    %v1604 = vpack.c.b16 %v1573, %v1572
    %v1605 = vpack.c.b16 %v1575, %v1574
    %v1606 = vpack.c.b16 %v1577, %v1576
    %v1607 = vpack.c.b16 %v1579, %v1578
    %v1608 = vpack.c.b16 %v1581, %v1580
    %v1609 = vpack.c.b16 %v1583, %v1582
    %v1610 = vpack.c.b16 %v1585, %v1584
    %v1611 = vpack.c.b16 %v1587, %v1586
    %1636 = vmatprep.subr.bf16.mxu0 0
    %1637 = vmatpush1.bf16.msra.mxu0 %v1595
    %1638 = vmatprep.subr.bf16.mxu0 0
    %1639 = vmatpush1.bf16.msra.mxu0 %v1594
    %1640 = vmatprep.subr.bf16.mxu0 0
    %1641 = vmatpush1.bf16.msra.mxu0 %v1593
    %1642 = vmatprep.subr.bf16.mxu0 0
    %1643 = vmatpush1.bf16.msra.mxu0 %v1592
    %1644 = vmatprep.subr.bf16.mxu0 0
    %1645 = vmatpush1.bf16.msra.mxu0 %v1591
    %1646 = vmatprep.subr.bf16.mxu0 0
    %1647 = vmatpush1.bf16.msra.mxu0 %v1590
    %1648 = vmatprep.subr.bf16.mxu0 0
    %1649 = vmatpush1.bf16.msra.mxu0 %v1589
    %1650 = vmatprep.subr.bf16.mxu0 0
    %1651 = vmatpush1.bf16.msra.mxu0 %v1588
    %1652 = vmatprep.subr.bf16.mxu0 0
    %1653 = vmatpush2.bf16.msra.mxu0 %v1603
    %1654 = vmatprep.subr.bf16.mxu0 0
    %1655 = vmatpush2.bf16.msra.mxu0 %v1602
    %1656 = vmatprep.subr.bf16.mxu0 0
    %1657 = vmatpush2.bf16.msra.mxu0 %v1601
    %1658 = vmatprep.subr.bf16.mxu0 0
    %1659 = vmatpush2.bf16.msra.mxu0 %v1600
    %1660 = vmatprep.subr.bf16.mxu0 0
    %1661 = vmatpush2.bf16.msra.mxu0 %v1599
    %1662 = vmatprep.subr.bf16.mxu0 0
    %1663 = vmatpush2.bf16.msra.mxu0 %v1598
    %1664 = vmatprep.subr.bf16.mxu0 0
    %1665 = vmatpush2.bf16.msra.mxu0 %v1597
    %1666 = vmatprep.subr.bf16.mxu0 0
    %1667 = vmatpush2.bf16.msra.mxu0 %v1596
    %1668 = vmatprep.mubr.bf16.mxu0 %v1435
    %1669 = vmatmul.mubr.bf16.gmra.mxu0 %v1434
    %v1670 = vpop.f32.mrf.mxu0
    %v1671 = vadd.f32 %v1490, %v1670
    %v1672 = vpop.f32.mrf.mxu0
    %v1673 = vpop.f32.mrf.mxu0
    %v1674 = vpop.f32.mrf.mxu0
    %1675 = vdwg.mxu0
    %1676 = vmatprep.subr.bf16.mxu0 0
    %1677 = vmatpush1.bf16.msra.mxu0 %v1611
    %1678 = vmatprep.subr.bf16.mxu0 0
    %1679 = vmatpush1.bf16.msra.mxu0 %v1610
    %1680 = vmatprep.subr.bf16.mxu0 0
    %1681 = vmatpush1.bf16.msra.mxu0 %v1609
    %1682 = vmatprep.subr.bf16.mxu0 0
    %1683 = vmatpush1.bf16.msra.mxu0 %v1608
    %1684 = vmatprep.subr.bf16.mxu0 0
    %1685 = vmatpush1.bf16.msra.mxu0 %v1607
    %1686 = vmatprep.subr.bf16.mxu0 0
    %1687 = vmatpush1.bf16.msra.mxu0 %v1606
    %1688 = vmatprep.subr.bf16.mxu0 0
    %1689 = vmatpush1.bf16.msra.mxu0 %v1605
    %1690 = vmatprep.subr.bf16.mxu0 0
    %1691 = vmatpush1.bf16.msra.mxu0 %v1604
    %1692 = vmatprep.subr.bf16.mxu0 0
    %1693 = vmatpush2.bf16.msra.mxu0 0
    %1694 = vmatprep.subr.bf16.mxu0 0
    %1695 = vmatpush2.bf16.msra.mxu0 0
    %1696 = vmatprep.subr.bf16.mxu0 0
    %1697 = vmatpush2.bf16.msra.mxu0 0
    %1698 = vmatprep.subr.bf16.mxu0 0
    %1699 = vmatpush2.bf16.msra.mxu0 0
    %1700 = vmatprep.subr.bf16.mxu0 0
    %1701 = vmatpush2.bf16.msra.mxu0 0
    %1702 = vmatprep.subr.bf16.mxu0 0
    %1703 = vmatpush2.bf16.msra.mxu0 0
    %1704 = vmatprep.subr.bf16.mxu0 0
    %1705 = vmatpush2.bf16.msra.mxu0 0
    %1706 = vmatprep.subr.bf16.mxu0 0
    %1707 = vmatpush2.bf16.msra.mxu0 0
    %1708 = vmatprep.mubr.bf16.mxu0 0
    %1709 = vmatmul.mubr.bf16.gmra.mxu0 %v1436
    %v1710 = vpop.f32.mrf.mxu0
    %v1711 = vadd.f32 %v1671, %v1710
    %v1712 = vpop.f32.mrf.mxu0
    %v1713 = vpop.f32.mrf.mxu0
    %v1714 = vpop.f32.mrf.mxu0
    %1715 = vdwg.mxu0
    %v1716 = vmax.f32 %v1711, 0.0
    %v1717 = vpack.c.bf16 %v1716, %v1716
    %v1718 = vld [vmem:[#allocation4] sm:$0xf]
    %v1719 = vld [vmem:[#allocation4 + $0x4] sm:$0xf]
    %v1720 = vld [vmem:[#allocation4 + $0x8] sm:$0xf]
    %v1721 = vld [vmem:[#allocation4 + $0xc] sm:$0xf]
    %v1722 = vld [vmem:[#allocation4 + $0x10] sm:$0xf]
    %v1723 = vld [vmem:[#allocation4 + $0x14] sm:$0xf]
    %v1724 = vld [vmem:[#allocation4 + $0x18] sm:$0xf]
    %v1725 = vld [vmem:[#allocation4 + $0x1c] sm:$0xf]
    %v1726 = vld [vmem:[#allocation4 + $0x20] sm:$0xf]
    %v1727 = vld [vmem:[#allocation4 + $0x24] sm:$0xf]
    %v1728 = vld [vmem:[#allocation4 + $0x28] sm:$0xf]
    %v1729 = vld [vmem:[#allocation4 + $0x2c] sm:$0xf]
    %v1730 = vld [vmem:[#allocation4 + $0x30] sm:$0xf]
    %v1731 = vld [vmem:[#allocation4 + $0x34] sm:$0xf]
    %v1732 = vld [vmem:[#allocation4 + $0x38] sm:$0xf]
    %v1733 = vld [vmem:[#allocation4 + $0x3c] sm:$0xf]
    %v1734 = vld [vmem:[%s6] sm:$0x1]
    %v1736 = vlaneseq
    %v1737 = vshrl.u32 %v1736, 7
    %v1738 = vsub.s32 0, %v1737
    %v1739 = vrot.slane %v1734, %v1738
    %v1757 = vunpack.c.l.b16 %v1718
    %v1758 = vunpack.c.l.b16 %v1719
    %v1759 = vunpack.c.l.b16 %v1720
    %v1760 = vunpack.c.l.b16 %v1721
    %v1761 = vunpack.c.l.b16 %v1722
    %v1762 = vunpack.c.l.b16 %v1723
    %v1763 = vunpack.c.l.b16 %v1724
    %v1764 = vunpack.c.l.b16 %v1725
    %v1765 = vunpack.c.l.b16 %v1726
    %v1766 = vunpack.c.l.b16 %v1727
    %v1767 = vunpack.c.l.b16 %v1728
    %v1768 = vunpack.c.l.b16 %v1729
    %v1769 = vunpack.c.l.b16 %v1730
    %v1770 = vunpack.c.l.b16 %v1731
    %v1771 = vunpack.c.l.b16 %v1732
    %v1772 = vunpack.c.l.b16 %v1733
    %v1773 = vpack.c.b16 %v1758, %v1757
    %v1774 = vpack.c.b16 %v1760, %v1759
    %v1775 = vpack.c.b16 %v1762, %v1761
    %v1776 = vpack.c.b16 %v1764, %v1763
    %v1777 = vpack.c.b16 %v1766, %v1765
    %v1778 = vpack.c.b16 %v1768, %v1767
    %v1779 = vpack.c.b16 %v1770, %v1769
    %v1780 = vpack.c.b16 %v1772, %v1771
    %1789 = vmatprep.subr.bf16.mxu0 0
    %1790 = vmatpush1.bf16.msra.mxu0 %v1780
    %1791 = vmatprep.subr.bf16.mxu0 0
    %1792 = vmatpush1.bf16.msra.mxu0 %v1779
    %1793 = vmatprep.subr.bf16.mxu0 0
    %1794 = vmatpush1.bf16.msra.mxu0 %v1778
    %1795 = vmatprep.subr.bf16.mxu0 0
    %1796 = vmatpush1.bf16.msra.mxu0 %v1777
    %1797 = vmatprep.subr.bf16.mxu0 0
    %1798 = vmatpush1.bf16.msra.mxu0 %v1776
    %1799 = vmatprep.subr.bf16.mxu0 0
    %1800 = vmatpush1.bf16.msra.mxu0 %v1775
    %1801 = vmatprep.subr.bf16.mxu0 0
    %1802 = vmatpush1.bf16.msra.mxu0 %v1774
    %1803 = vmatprep.subr.bf16.mxu0 0
    %1804 = vmatpush1.bf16.msra.mxu0 %v1773
    %1805 = vmatprep.subr.bf16.mxu0 0
    %1806 = vmatpush2.bf16.msra.mxu0 0
    %1807 = vmatprep.subr.bf16.mxu0 0
    %1808 = vmatpush2.bf16.msra.mxu0 0
    %1809 = vmatprep.subr.bf16.mxu0 0
    %1810 = vmatpush2.bf16.msra.mxu0 0
    %1811 = vmatprep.subr.bf16.mxu0 0
    %1812 = vmatpush2.bf16.msra.mxu0 0
    %1813 = vmatprep.subr.bf16.mxu0 0
    %1814 = vmatpush2.bf16.msra.mxu0 0
    %1815 = vmatprep.subr.bf16.mxu0 0
    %1816 = vmatpush2.bf16.msra.mxu0 0
    %1817 = vmatprep.subr.bf16.mxu0 0
    %1818 = vmatpush2.bf16.msra.mxu0 0
    %1819 = vmatprep.subr.bf16.mxu0 0
    %1820 = vmatpush2.bf16.msra.mxu0 0
    %1821 = vmatprep.mubr.bf16.mxu0 0
    %1822 = vmatmul.mubr.bf16.gmra.mxu0 %v1717
    %v1823 = vpop.f32.mrf.mxu0
    %v1824 = vadd.f32 %v1739, %v1823
    %v1825 = vpop.f32.mrf.mxu0
    %v1826 = vpop.f32.mrf.mxu0
    %v1827 = vpop.f32.mrf.mxu0
    %1828 = vdwg.mxu0
    %v1829 = vpack.c.bf16 %v1824, %v1824
    %1830 = vst [vmem:[%s7] sm:$0x1] %v1829
    // Predicated region
    $region38: #{lenet300_100_forward.1} parent=1 // pred_check
      _
    $region39: #{lenet300_100_forward.1} parent=1 // pred_check_branch
      %1832 = sbr.rel (0) target = $region41
    $region40: #{lenet300_100_forward.1} parent=1 // pred_region
      _
    $region41: #{lenet300_100_forward.1} parent=1 // pred_fallthru
      _
    // Predicated region
    $region42: #{lenet300_100_forward.1} parent=1 // pred_check
      _
    $region43: #{lenet300_100_forward.1} parent=1 // pred_check_branch
      %1834 = sbr.rel (0) target = $region45
    $region44: #{lenet300_100_forward.1} parent=1 // pred_region
      _
    $region45: #{lenet300_100_forward.1} parent=1 // pred_fallthru
      _
    %1835 = vsyncpa [#allocation3], 1
    %1836 = vsyncpa [#allocation5], 1

</llo_original>
